<compile_context>
chip_gen: v7x
topology: tpu7x:2x2x1
jax: 0.10.0
libtpu: 0.0.40
codegen_flags: <defaults>
</compile_context>

<pallas_src>
import math

import numpy as np
import jax
import jax.numpy as jnp
from jax import lax
from jax.experimental import pallas as pl
from jax.experimental.pallas import tpu as pltpu

PADDING = 2   # DPFNO1d.padding
_KPAD = 8     # pad tiny contracting dims (in_channels) up to one sublane tile


# ----------------------------------- GELU ------------------------------------

def _gelu_tanh(x):
    """tanh-form GELU (single EUP tanh); |err| vs exact erf-GELU < 1e-3."""
    c = np.float32(math.sqrt(2.0 / math.pi))
    return 0.5 * x * (1.0 + jnp.tanh(c * (x + np.float32(0.044715) * x * x * x)))


# ---------------------------- fused forward kernel ---------------------------

def _make_fused_kernel(*, M, TB, width, out_ch, n_blocks):
    channels = [width * (2 ** i) for i in range(n_blocks)]   # block input widths
    bf16 = jnp.bfloat16
    f32 = jnp.float32

    def kernel(*refs):
        (xin_ref, fc0w_ref, fc0b_ref, abp_ref, crcip_ref) = refs[:5]
        blk_refs = refs[5:5 + 3 * n_blocks]
        (fc1w_ref, fc1b_ref, fc2w_ref, fc2b_ref, o_ref, h_scr) = \
            refs[5 + 3 * n_blocks:]

        # ---- fc0: (W,kdim)@(kdim,TB*Lp); packed bias is zero at pad columns,
        # and the padded input columns are exactly 0, so the pad positions of
        # the initial state are exactly 0 (matches torch's F.pad after fc0).
        W0 = channels[0]
        h0 = jnp.dot(fc0w_ref[...], xin_ref[0], preferred_element_type=f32)
        h_scr[0:W0, :] = h0 + fc0b_ref[...]          # (W, TB*Lp)

        abp = abp_ref[...]        # bf16 (TB*Lp, 2*M*TB)  packed truncated rDFT
        crcip = crcip_ref[...]    # bf16 (2*M*TB, TB*Lp)  packed inverse rDFT

        # NOTE: every row/column of h_scr that is later read is fully rewritten
        # on every grid step, so no stale data can leak across batch tiles.
        for bi, C in enumerate(channels):
            wstack = blk_refs[3 * bi + 0]   # (M, 2C, C) bf16  [Wr_m^T ; Wi_m^T]
            cw = blk_refs[3 * bi + 1]       # (C, C)     bf16  Conv1d(k=1) weight
            cb = blk_refs[3 * bi + 2]       # (C, 1)     f32   Conv1d bias

            h_c = h_scr[0:C, :].astype(bf16)                         # (C, TB*Lp)
            # truncated rDFT for all TB groups: one matmul.
            F = jnp.dot(h_c, abp, preferred_element_type=f32).astype(bf16)
            # per-mode complex channel mixing -> O buffer (C, 2*M*TB):
            # one (2C,C)@(C,2TB) dot per mode, results concatenated on lanes
            # in the same [Re | Im]-per-mode order as the CrCi rows.
            ocols = []
            for m in range(M):
                Fm = F[:, 2 * m * TB:2 * (m + 1) * TB]               # (C, 2TB)
                G = jnp.dot(wstack[m], Fm, preferred_element_type=f32)
                o_re = G[0:C, 0:TB] - G[C:2 * C, TB:2 * TB]
                o_im = G[C:2 * C, 0:TB] + G[0:C, TB:2 * TB]
                ocols.append(o_re)
                ocols.append(o_im)
            O = jnp.concatenate(ocols, axis=1).astype(bf16)          # (C, 2*M*TB)
            # inverse rDFT for all modes/groups: ONE matmul (was M rank-1 adds)
            x1 = jnp.dot(O, crcip, preferred_element_type=f32)       # (C, TB*Lp)
            # 1x1 conv path + bias, GELU; "concat" == write the next C rows.
            x2 = jnp.dot(cw[...], h_c, preferred_element_type=f32)   # (C, TB*Lp)
            h_scr[C:2 * C, :] = _gelu_tanh(x1 + x2 + cb[...])

        # ---- head over the FULL padded columns (pad cols sliced off in the
        # wrapper; no masked sub-tile lane slice of the big state here).
        Cf = 2 * channels[-1]
        hS = h_scr[0:Cf, :].astype(bf16)                             # (Cf, TB*Lp)
        g1 = jnp.dot(fc1w_ref[...], hS,
                     preferred_element_type=f32) + fc1b_ref[...]     # (128, TB*Lp)
        g1 = _gelu_tanh(g1)
        if out_ch == 1:
            # N=1: VPU multiply + sublane reduction instead of 1-col MXU matmul
            o2 = jnp.sum(g1 * fc2w_ref[...], axis=0, keepdims=True)  # (1, TB*Lp)
        else:
            o2 = lax.dot_general(fc2w_ref[...].astype(bf16), g1.astype(bf16),
                                 dimension_numbers=(((0,), (0,)), ((), ())),
                                 preferred_element_type=f32)
        o_ref[0] = o2 + fc2b_ref[...]

    return kernel


# ------------------ parameter setup (all prep hoisted here) -------------------

def _rdft_matrices(L, M):
    """Real matrices realizing truncated rfft (A, Bneg) and irfft (Cr, Ci)."""
    assert M <= L // 2 + 1, "modes must be <= L//2+1"
    n = np.arange(L, dtype=np.float64)
    k = np.arange(M, dtype=np.float64)
    ang = 2.0 * np.pi * np.outer(n, k) / L        # (L, M)
    A = np.cos(ang)                               # X_re = x @ A
    Bneg = -np.sin(ang)                           # X_im = x @ Bneg
    c = np.full(M, 2.0)
    ci = np.ones(M)
    c[0] = 1.0
    ci[0] = 0.0                                   # irfft ignores Im of DC bin
    if L % 2 == 0 and M - 1 >= L // 2:
        c[L // 2] = 1.0
        ci[L // 2] = 0.0                          # ... and of the Nyquist bin
    angT = ang.T                                  # (M, L)
    Cr = (c[:, None] / L) * np.cos(angT)
    Ci = -(c[:, None] * ci[:, None] / L) * np.sin(angT)
    return A, Bneg, Cr, Ci


def init_params(key, in_channels, out_channels, modes, width, num_blocks):
    keys = iter(jax.random.split(key, 6 + 4 * num_blocks))
    bf16 = jnp.bfloat16

    def u(shape, lo, hi):
        return jax.random.uniform(next(keys), shape, jnp.float32, lo, hi)

    params = {}
    b0 = 1.0 / math.sqrt(in_channels)
    fc0_w = u((in_channels, width), -b0, b0)              # Linear(in_ch, width)
    fc0_b = u((width,), -b0, b0)
    kdim = max(_KPAD, -(-in_channels // 8) * 8)
    params.update(
        fc0_w=fc0_w, fc0_b=fc0_b,
        # kernel-ready: pre-transposed, K padded to a full sublane tile, bf16
        fc0_wT_pad=(jnp.zeros((width, kdim), bf16)
                    .at[:, :in_channels].set(fc0_w.T.astype(bf16))),
    )

    blocks = []
    c = width
    for _ in range(num_blocks):
        scale = 1.0 / (c * c)                            # SpectralConv1d scale
        wr = u((c, c, modes), 0.0, scale)                # Re of weights1
        wi = u((c, c, modes), 0.0, scale)                # Im of weights1
        bc = 1.0 / math.sqrt(c)
        conv_w = u((c, c), -bc, bc)                      # Conv1d(c, c, 1) weight
        conv_b = u((c,), -bc, bc)                        # Conv1d bias
        # stacked per-mode weight [Wr_m^T ; Wi_m^T] -> one dot per mode
        wstack = jnp.concatenate([jnp.transpose(wr, (2, 1, 0)),
                                  jnp.transpose(wi, (2, 1, 0))], axis=1)
        blocks.append(dict(
            wr=wr, wi=wi, conv_w=conv_w, conv_b=conv_b,          # f32 (reference)
            wstack=wstack.astype(bf16),                          # (M, 2C, C)
            conv_wk=conv_w.astype(bf16),                         # (C, C)
            conv_b_col=conv_b.reshape(c, 1),                     # (C, 1) f32
        ))
        c *= 2
    params['blocks'] = blocks

    w_final = width * (2 ** num_blocks)
    b1 = 1.0 / math.sqrt(w_final)
    fc1_w = u((w_final, 128), -b1, b1)                   # Linear(w_final, 128)
    fc1_b = u((128,), -b1, b1)
    b2 = 1.0 / math.sqrt(128)
    fc2_w = u((128, out_channels), -b2, b2)              # Linear(128, out_ch)
    fc2_b = u((out_channels,), -b2, b2)
    params.update(
        fc1_w=fc1_w, fc1_b=fc1_b, fc2_w=fc2_w, fc2_b=fc2_b,
        fc1_wT=fc1_w.T.astype(bf16), fc1_b_col=fc1_b.reshape(128, 1),
        fc2_b_col=fc2_b.reshape(out_channels, 1),
    )
    return params


# ------------------------------ forward (Pallas) ------------------------------

def _full_spec(arr):
    nd = arr.ndim
    return pl.BlockSpec(arr.shape, lambda b, nd=nd: (0,) * nd)


def dpfno1d_forward(params, x, grid, *, padding=PADDING, target_lanes=256):
    B, S, _ = x.shape
    Lp = S + padding
    blocks = params['blocks']
    n_blocks = len(blocks)
    M = blocks[0]['wstack'].shape[0]
    W = params['fc0_wT_pad'].shape[0]
    kdim = params['fc0_wT_pad'].shape[1]
    C_final = W * (2 ** n_blocks)
    out_ch = params['fc2_w'].shape[1]

    # --- batch tile TB packed along the lane axis (aim for ~target_lanes).
    # (On v7x one may prefer B/TB >= 2 so both TensorCores get a grid step.)
    TB = 1
    for t in range(1, B + 1):
        if B % t == 0 and t * Lp <= max(target_lanes, Lp):
            TB = t
    nsteps = B // TB
    TBLp = TB * Lp

    # --- packed (block-diagonal per batch group) truncated DFT / iDFT matrices
    # Column/row layout: per mode m, lanes [2m*TB, 2m*TB+TB) = Re, next TB = Im,
    # so the kernel extracts each mode with ONE contiguous lane slice and the O
    # buffer maps onto CrCi rows directly (single O @ CrCi matmul per block).
    A, Bneg, Cr, Ci = _rdft_matrices(Lp, M)
    ABp = np.zeros((TBLp, 2 * M * TB), np.float32)
    CrCip = np.zeros((2 * M * TB, TBLp), np.float32)
    for t in range(TB):
        for m in range(M):
            ABp[t * Lp:(t + 1) * Lp, 2 * m * TB + t] = A[:, m]
            ABp[t * Lp:(t + 1) * Lp, (2 * m + 1) * TB + t] = Bneg[:, m]
            CrCip[2 * m * TB + t, t * Lp:(t + 1) * Lp] = Cr[m, :]
            CrCip[(2 * m + 1) * TB + t, t * Lp:(t + 1) * Lp] = Ci[m, :]
    ABp = jnp.asarray(ABp, jnp.bfloat16)
    CrCip = jnp.asarray(CrCip, jnp.bfloat16)

    # fc0 bias packed over columns, zeroed at pad positions (pad cols stay 0).
    valid = np.zeros((TBLp,), np.float32)
    for t in range(TB):
        valid[t * Lp:t * Lp + S] = 1.0
    fc0_b_packed = params['fc0_b'][:, None] * jnp.asarray(valid)[None, :]

    # --- input glue: NCL layout, pad channels->kdim and positions->Lp, pack TB
    # batch elements group-major along lanes, cast to bf16 for the MXU.
    xin = jnp.concatenate([x, grid], axis=-1)             # (B, S, in_ch)
    in_ch = xin.shape[-1]
    xin = jnp.swapaxes(xin, 1, 2)                         # (B, in_ch, S)
    xin = jnp.pad(xin, ((0, 0), (0, kdim - in_ch), (0, Lp - S)))
    xin = (xin.reshape(nsteps, TB, kdim, Lp)
           .transpose(0, 2, 1, 3).reshape(nsteps, kdim, TBLp)
           .astype(jnp.bfloat16))

    inputs = [xin, params['fc0_wT_pad'], fc0_b_packed, ABp, CrCip]
    in_specs = [pl.BlockSpec((1, kdim, TBLp), lambda b: (b, 0, 0))]
    in_specs += [_full_spec(a) for a in inputs[1:]]
    for blk in blocks:
        for a in (blk['wstack'], blk['conv_wk'], blk['conv_b_col']):
            inputs.append(a)
            in_specs.append(_full_spec(a))
    for a in (params['fc1_wT'], params['fc1_b_col'],
              params['fc2_w'], params['fc2_b_col']):
        inputs.append(a)
        in_specs.append(_full_spec(a))
    # TODO(synk): mark the grid-invariant weight specs pipeline_mode=
    # pl.Buffered(1) to halve their VMEM when it gets tight on v7x.

    # --- explicit VMEM budget from actual buffer sizes (raises v5e's ~16 MiB
    # default scoped limit; stays under v7x's 64 MiB physical VMEM).
    def _nbytes(a):
        return int(np.prod(a.shape)) * np.dtype(a.dtype).itemsize
    blk_bytes = (kdim * TBLp * 2 + sum(_nbytes(a) for a in inputs[1:])
                 + out_ch * TBLp * 4)
    scratch_bytes = C_final * TBLp * 4
    need = 2 * blk_bytes + scratch_bytes          # double-buffered specs + scratch
    vmem_limit = int(max(32 * 2 ** 20, min(96 * 2 ** 20, 2 * need)))

    kernel = _make_fused_kernel(M=M, TB=TB, width=W, out_ch=out_ch,
                                n_blocks=n_blocks)

    out = pl.pallas_call(
        kernel,
        out_shape=jax.ShapeDtypeStruct((nsteps, out_ch, TBLp), jnp.float32),
        grid=(nsteps,),
        in_specs=in_specs,
        out_specs=pl.BlockSpec((1, out_ch, TBLp), lambda b: (b, 0, 0)),
        scratch_shapes=[pltpu.VMEM((C_final, TBLp), jnp.float32)],
        compiler_params=pltpu.CompilerParams(
            dimension_semantics=("parallel",),
            vmem_limit_bytes=vmem_limit),
    )(*inputs)

    # unpack: (nsteps, out_ch, TB*Lp) -> (B, S, 1, out_ch), dropping pad columns
    out = (out.reshape(nsteps, out_ch, TB, Lp)
           .transpose(0, 2, 1, 3).reshape(B, out_ch, Lp)[:, :, :S])
    return jnp.swapaxes(out, 1, 2)[:, :, None, :]


# ----------------------------- pure-JAX reference -----------------------------

def _gelu_ref(x):
    return 0.5 * x * (1.0 + jax.scipy.special.erf(x / math.sqrt(2.0)))


def _spectral_conv_ref(x, wr, wi, modes):
    B, _, L = x.shape
    K = L // 2 + 1
    x_ft = jnp.fft.rfft(x, axis=-1)
    w = (wr + 1j * wi).astype(jnp.complex64)
    prod = jnp.einsum('bix,iox->box', x_ft[:, :, :modes], w,
                      precision=lax.Precision.HIGHEST)
    out_ft = jnp.zeros((B, wr.shape[1], K), jnp.complex64).at[:, :, :modes].set(prod)
    return jnp.fft.irfft(out_ft, n=L, axis=-1)


def dpfno1d_reference(params, x, grid, *, modes, padding=PADDING):
    hp = lax.Precision.HIGHEST
    S = x.shape[1]
    h = jnp.concatenate([x, grid], axis=-1)
    h = jnp.dot(h, params['fc0_w'], precision=hp) + params['fc0_b']
    h = h.transpose(0, 2, 1)
    h = jnp.pad(h, ((0, 0), (0, 0), (0, padding)))
    for blk in params['blocks']:
        x1 = _spectral_conv_ref(h, blk['wr'], blk['wi'], modes)
        x2 = (jnp.einsum('oi,bil->bol', blk['conv_w'], h, precision=hp)
              + blk['conv_b'][None, :, None])
        y = _gelu_ref(x1 + x2)
        h = jnp.concatenate([h, y], axis=1)
    h = h[..., :S].transpose(0, 2, 1)
    h = _gelu_ref(jnp.dot(h, params['fc1_w'], precision=hp) + params['fc1_b'])
    h = jnp.dot(h, params['fc2_w'], precision=hp) + params['fc2_b']
    return h[:, :, None, :]


# ------------------------------------ main ------------------------------------

if __name__ == "__main__":
    # Small shapes consistent with the module (modes <= (S+padding)//2 + 1).
    B, S = 2, 16
    in_channels, out_channels = 2, 1
    modes, width, num_blocks = 4, 8, 2

    key = jax.random.PRNGKey(0)
    kx, kp = jax.random.split(key)
    params = init_params(kp, in_channels, out_channels, modes, width, num_blocks)

    x = jax.random.normal(kx, (B, S, in_channels - 1), jnp.float32)
    grid_c = jnp.broadcast_to(
        jnp.linspace(0.0, 1.0, S, dtype=jnp.float32)[None, :, None], (B, S, 1))

    fwd = jax.jit(dpfno1d_forward)
    out = jax.block_until_ready(fwd(params, x, grid_c))
    ref = jax.block_until_ready(dpfno1d_reference(params, x, grid_c, modes=modes))

    assert out.shape == (B, S, 1, out_channels), out.shape
    err = float(jnp.max(jnp.abs(out - ref)))
    # Tolerance accounts for bf16 MXU operands (f32 accumulation) and the
    # tanh-form GELU vs the f32/HIGHEST-precision erf reference; outputs are
    # O(1), typical max-abs error is ~1e-2.
    assert err < 1e-1, f"max abs error vs pure-JAX reference too large: {err}"
    print("KERNEL_OK")
</pallas_src>

<mosaic_0001>
module attributes {stable_mosaic.version = 11 : i64} {
  func.func @kernel(%arg0: i32, %arg1: memref<1x8x36xbf16, #tpu.memory_space<vmem>>, %arg2: memref<8x8xbf16, #tpu.memory_space<vmem>>, %arg3: memref<8x36xf32, #tpu.memory_space<vmem>>, %arg4: memref<36x16xbf16, #tpu.memory_space<vmem>>, %arg5: memref<16x36xbf16, #tpu.memory_space<vmem>>, %arg6: memref<4x16x8xbf16, #tpu.memory_space<vmem>>, %arg7: memref<8x8xbf16, #tpu.memory_space<vmem>>, %arg8: memref<8x1xf32, #tpu.memory_space<vmem>>, %arg9: memref<4x32x16xbf16, #tpu.memory_space<vmem>>, %arg10: memref<16x16xbf16, #tpu.memory_space<vmem>>, %arg11: memref<16x1xf32, #tpu.memory_space<vmem>>, %arg12: memref<128x32xbf16, #tpu.memory_space<vmem>>, %arg13: memref<128x1xf32, #tpu.memory_space<vmem>>, %arg14: memref<128x1xf32, #tpu.memory_space<vmem>>, %arg15: memref<1x1xf32, #tpu.memory_space<vmem>>, %arg16: memref<1x1x36xf32, #tpu.memory_space<vmem>>, %arg17: memref<32x36xf32, #tpu.memory_space<vmem>>) attributes {dimension_semantics = [#tpu.dimension_semantics<parallel>], iteration_bounds = array<i64: 1>, scalar_prefetch = 0 : i64, scratch_operands = 1 : i64, tpu.core_type = #tpu.core_type<tc>, window_params = [{transform_indices = @transform_0, window_bounds = array<i64: 1, 8, 36>}, {pipeline_mode = #tpu.pipeline_mode<synchronous>, transform_indices = @transform_1, window_bounds = array<i64: 8, 8>}, {pipeline_mode = #tpu.pipeline_mode<synchronous>, transform_indices = @transform_2, window_bounds = array<i64: 8, 36>}, {pipeline_mode = #tpu.pipeline_mode<synchronous>, transform_indices = @transform_3, window_bounds = array<i64: 36, 16>}, {pipeline_mode = #tpu.pipeline_mode<synchronous>, transform_indices = @transform_4, window_bounds = array<i64: 16, 36>}, {pipeline_mode = #tpu.pipeline_mode<synchronous>, transform_indices = @transform_5, window_bounds = array<i64: 4, 16, 8>}, {pipeline_mode = #tpu.pipeline_mode<synchronous>, transform_indices = @transform_6, window_bounds = array<i64: 8, 8>}, {pipeline_mode = #tpu.pipeline_mode<synchronous>, transform_indices = @transform_7, window_bounds = array<i64: 8, 1>}, {pipeline_mode = #tpu.pipeline_mode<synchronous>, transform_indices = @transform_8, window_bounds = array<i64: 4, 32, 16>}, {pipeline_mode = #tpu.pipeline_mode<synchronous>, transform_indices = @transform_9, window_bounds = array<i64: 16, 16>}, {pipeline_mode = #tpu.pipeline_mode<synchronous>, transform_indices = @transform_10, window_bounds = array<i64: 16, 1>}, {pipeline_mode = #tpu.pipeline_mode<synchronous>, transform_indices = @transform_11, window_bounds = array<i64: 128, 32>}, {pipeline_mode = #tpu.pipeline_mode<synchronous>, transform_indices = @transform_12, window_bounds = array<i64: 128, 1>}, {pipeline_mode = #tpu.pipeline_mode<synchronous>, transform_indices = @transform_13, window_bounds = array<i64: 128, 1>}, {pipeline_mode = #tpu.pipeline_mode<synchronous>, transform_indices = @transform_14, window_bounds = array<i64: 1, 1>}, {transform_indices = @transform_15, window_bounds = array<i64: 1, 1, 36>}]} {
    %c0 = arith.constant 0 : index
    %c0_0 = arith.constant 0 : index
    %0 = vector.load %arg2[%c0, %c0_0] : memref<8x8xbf16, #tpu.memory_space<vmem>>, vector<8x8xbf16>
    %c0_1 = arith.constant 0 : index
    %c0_2 = arith.constant 0 : index
    %c0_3 = arith.constant 0 : index
    %1 = vector.load %arg1[%c0_1, %c0_2, %c0_3] : memref<1x8x36xbf16, #tpu.memory_space<vmem>>, vector<1x8x36xbf16>
    %2 = vector.shape_cast %1 : vector<1x8x36xbf16> to vector<8x36xbf16>
    %cst = arith.constant dense<0.000000e+00> : vector<8x36xf32>
    %3 = tpu.matmul %0, %2, %cst {dimension_numbers = #tpu.dot_dimension_numbers<[1], [0], [0], [1], [0, 0, 1, 1], [], []>} : vector<8x8xbf16>, vector<8x36xbf16>, vector<8x36xf32> -> vector<8x36xf32>
    %c0_4 = arith.constant 0 : index
    %c0_5 = arith.constant 0 : index
    %4 = vector.load %arg3[%c0_4, %c0_5] : memref<8x36xf32, #tpu.memory_space<vmem>>, vector<8x36xf32>
    %5 = arith.addf %3, %4 : vector<8x36xf32>
    %c0_6 = arith.constant 0 : index
    %c0_7 = arith.constant 0 : index
    %6 = vector.load %arg17[%c0_6, %c0_7] : memref<32x36xf32, #tpu.memory_space<vmem>>, vector<8x36xf32>
    tpu.vector_store %arg17[%c0_6, %c0_7], %5 {strides = array<i32>} : memref<32x36xf32, #tpu.memory_space<vmem>>, vector<8x36xf32>,
    %c0_8 = arith.constant 0 : index
    %c0_9 = arith.constant 0 : index
    %7 = vector.load %arg4[%c0_8, %c0_9] : memref<36x16xbf16, #tpu.memory_space<vmem>>, vector<36x16xbf16>
    %c0_10 = arith.constant 0 : index
    %c0_11 = arith.constant 0 : index
    %8 = vector.load %arg5[%c0_10, %c0_11] : memref<16x36xbf16, #tpu.memory_space<vmem>>, vector<16x36xbf16>
    %c0_12 = arith.constant 0 : index
    %c0_13 = arith.constant 0 : index
    %9 = vector.load %arg17[%c0_12, %c0_13] : memref<32x36xf32, #tpu.memory_space<vmem>>, vector<8x36xf32>
    %10 = arith.truncf %9 : vector<8x36xf32> to vector<8x36xbf16>
    %cst_14 = arith.constant dense<0.000000e+00> : vector<8x16xf32>
    %11 = tpu.matmul %10, %7, %cst_14 {dimension_numbers = #tpu.dot_dimension_numbers<[1], [0], [0], [1], [0, 0, 1, 1], [], []>} : vector<8x36xbf16>, vector<36x16xbf16>, vector<8x16xf32> -> vector<8x16xf32>
    %12 = arith.truncf %11 : vector<8x16xf32> to vector<8x16xbf16>
    %13 = vector.extract_strided_slice %12 {offsets = [0, 0], sizes = [8, 4], strides = [1, 1]} : vector<8x16xbf16> to vector<8x4xbf16>
    %c0_15 = arith.constant 0 : index
    %c0_16 = arith.constant 0 : index
    %c0_17 = arith.constant 0 : index
    %14 = vector.load %arg6[%c0_15, %c0_16, %c0_17] : memref<4x16x8xbf16, #tpu.memory_space<vmem>>, vector<1x16x8xbf16>
    %15 = vector.shape_cast %14 : vector<1x16x8xbf16> to vector<16x8xbf16>
    %cst_18 = arith.constant dense<0.000000e+00> : vector<16x4xf32>
    %16 = tpu.matmul %15, %13, %cst_18 {dimension_numbers = #tpu.dot_dimension_numbers<[1], [0], [0], [1], [0, 0, 1, 1], [], []>} : vector<16x8xbf16>, vector<8x4xbf16>, vector<16x4xf32> -> vector<16x4xf32>
    %17 = vector.extract_strided_slice %16 {offsets = [0, 0], sizes = [8, 2], strides = [1, 1]} : vector<16x4xf32> to vector<8x2xf32>
    %18 = vector.extract_strided_slice %16 {offsets = [8, 2], sizes = [8, 2], strides = [1, 1]} : vector<16x4xf32> to vector<8x2xf32>
    %19 = arith.subf %17, %18 : vector<8x2xf32>
    %20 = vector.extract_strided_slice %16 {offsets = [8, 0], sizes = [8, 2], strides = [1, 1]} : vector<16x4xf32> to vector<8x2xf32>
    %21 = vector.extract_strided_slice %16 {offsets = [0, 2], sizes = [8, 2], strides = [1, 1]} : vector<16x4xf32> to vector<8x2xf32>
    %22 = arith.addf %20, %21 : vector<8x2xf32>
    %23 = vector.extract_strided_slice %12 {offsets = [0, 4], sizes = [8, 4], strides = [1, 1]} : vector<8x16xbf16> to vector<8x4xbf16>
    %c1 = arith.constant 1 : index
    %c0_19 = arith.constant 0 : index
    %c0_20 = arith.constant 0 : index
    %24 = vector.load %arg6[%c1, %c0_19, %c0_20] : memref<4x16x8xbf16, #tpu.memory_space<vmem>>, vector<1x16x8xbf16>
    %25 = vector.shape_cast %24 : vector<1x16x8xbf16> to vector<16x8xbf16>
    %cst_21 = arith.constant dense<0.000000e+00> : vector<16x4xf32>
    %26 = tpu.matmul %25, %23, %cst_21 {dimension_numbers = #tpu.dot_dimension_numbers<[1], [0], [0], [1], [0, 0, 1, 1], [], []>} : vector<16x8xbf16>, vector<8x4xbf16>, vector<16x4xf32> -> vector<16x4xf32>
    %27 = vector.extract_strided_slice %26 {offsets = [0, 0], sizes = [8, 2], strides = [1, 1]} : vector<16x4xf32> to vector<8x2xf32>
    %28 = vector.extract_strided_slice %26 {offsets = [8, 2], sizes = [8, 2], strides = [1, 1]} : vector<16x4xf32> to vector<8x2xf32>
    %29 = arith.subf %27, %28 : vector<8x2xf32>
    %30 = vector.extract_strided_slice %26 {offsets = [8, 0], sizes = [8, 2], strides = [1, 1]} : vector<16x4xf32> to vector<8x2xf32>
    %31 = vector.extract_strided_slice %26 {offsets = [0, 2], sizes = [8, 2], strides = [1, 1]} : vector<16x4xf32> to vector<8x2xf32>
    %32 = arith.addf %30, %31 : vector<8x2xf32>
    %33 = vector.extract_strided_slice %12 {offsets = [0, 8], sizes = [8, 4], strides = [1, 1]} : vector<8x16xbf16> to vector<8x4xbf16>
    %c2 = arith.constant 2 : index
    %c0_22 = arith.constant 0 : index
    %c0_23 = arith.constant 0 : index
    %34 = vector.load %arg6[%c2, %c0_22, %c0_23] : memref<4x16x8xbf16, #tpu.memory_space<vmem>>, vector<1x16x8xbf16>
    %35 = vector.shape_cast %34 : vector<1x16x8xbf16> to vector<16x8xbf16>
    %cst_24 = arith.constant dense<0.000000e+00> : vector<16x4xf32>
    %36 = tpu.matmul %35, %33, %cst_24 {dimension_numbers = #tpu.dot_dimension_numbers<[1], [0], [0], [1], [0, 0, 1, 1], [], []>} : vector<16x8xbf16>, vector<8x4xbf16>, vector<16x4xf32> -> vector<16x4xf32>
    %37 = vector.extract_strided_slice %36 {offsets = [0, 0], sizes = [8, 2], strides = [1, 1]} : vector<16x4xf32> to vector<8x2xf32>
    %38 = vector.extract_strided_slice %36 {offsets = [8, 2], sizes = [8, 2], strides = [1, 1]} : vector<16x4xf32> to vector<8x2xf32>
    %39 = arith.subf %37, %38 : vector<8x2xf32>
    %40 = vector.extract_strided_slice %36 {offsets = [8, 0], sizes = [8, 2], strides = [1, 1]} : vector<16x4xf32> to vector<8x2xf32>
    %41 = vector.extract_strided_slice %36 {offsets = [0, 2], sizes = [8, 2], strides = [1, 1]} : vector<16x4xf32> to vector<8x2xf32>
    %42 = arith.addf %40, %41 : vector<8x2xf32>
    %43 = vector.extract_strided_slice %12 {offsets = [0, 12], sizes = [8, 4], strides = [1, 1]} : vector<8x16xbf16> to vector<8x4xbf16>
    %c3 = arith.constant 3 : index
    %c0_25 = arith.constant 0 : index
    %c0_26 = arith.constant 0 : index
    %44 = vector.load %arg6[%c3, %c0_25, %c0_26] : memref<4x16x8xbf16, #tpu.memory_space<vmem>>, vector<1x16x8xbf16>
    %45 = vector.shape_cast %44 : vector<1x16x8xbf16> to vector<16x8xbf16>
    %cst_27 = arith.constant dense<0.000000e+00> : vector<16x4xf32>
    %46 = tpu.matmul %45, %43, %cst_27 {dimension_numbers = #tpu.dot_dimension_numbers<[1], [0], [0], [1], [0, 0, 1, 1], [], []>} : vector<16x8xbf16>, vector<8x4xbf16>, vector<16x4xf32> -> vector<16x4xf32>
    %47 = vector.extract_strided_slice %46 {offsets = [0, 0], sizes = [8, 2], strides = [1, 1]} : vector<16x4xf32> to vector<8x2xf32>
    %48 = vector.extract_strided_slice %46 {offsets = [8, 2], sizes = [8, 2], strides = [1, 1]} : vector<16x4xf32> to vector<8x2xf32>
    %49 = arith.subf %47, %48 : vector<8x2xf32>
    %50 = vector.extract_strided_slice %46 {offsets = [8, 0], sizes = [8, 2], strides = [1, 1]} : vector<16x4xf32> to vector<8x2xf32>
    %51 = vector.extract_strided_slice %46 {offsets = [0, 2], sizes = [8, 2], strides = [1, 1]} : vector<16x4xf32> to vector<8x2xf32>
    %52 = arith.addf %50, %51 : vector<8x2xf32>
    %53 = tpu.concatenate %19, %22, %29, %32, %39, %42, %49, %52 in 1 : vector<8x2xf32>, vector<8x2xf32>, vector<8x2xf32>, vector<8x2xf32>, vector<8x2xf32>, vector<8x2xf32>, vector<8x2xf32>, vector<8x2xf32> -> vector<8x16xf32>
    %54 = arith.truncf %53 : vector<8x16xf32> to vector<8x16xbf16>
    %cst_28 = arith.constant dense<0.000000e+00> : vector<8x36xf32>
    %55 = tpu.matmul %54, %8, %cst_28 {dimension_numbers = #tpu.dot_dimension_numbers<[1], [0], [0], [1], [0, 0, 1, 1], [], []>} : vector<8x16xbf16>, vector<16x36xbf16>, vector<8x36xf32> -> vector<8x36xf32>
    %c0_29 = arith.constant 0 : index
    %c0_30 = arith.constant 0 : index
    %56 = vector.load %arg7[%c0_29, %c0_30] : memref<8x8xbf16, #tpu.memory_space<vmem>>, vector<8x8xbf16>
    %cst_31 = arith.constant dense<0.000000e+00> : vector<8x36xf32>
    %57 = tpu.matmul %56, %10, %cst_31 {dimension_numbers = #tpu.dot_dimension_numbers<[1], [0], [0], [1], [0, 0, 1, 1], [], []>} : vector<8x8xbf16>, vector<8x36xbf16>, vector<8x36xf32> -> vector<8x36xf32>
    %58 = arith.addf %55, %57 : vector<8x36xf32>
    %c0_32 = arith.constant 0 : index
    %c0_33 = arith.constant 0 : index
    %59 = vector.load %arg8[%c0_32, %c0_33] : memref<8x1xf32, #tpu.memory_space<vmem>>, vector<8x1xf32>
    %60 = vector.broadcast %59 : vector<8x1xf32> to vector<8x36xf32>
    %61 = arith.addf %58, %60 : vector<8x36xf32>
    %cst_34 = arith.constant 5.000000e-01 : f32
    %62 = vector.broadcast %cst_34 : f32 to vector<8x36xf32>
    %63 = arith.mulf %62, %61 : vector<8x36xf32>
    %cst_35 = arith.constant 4.471500e-02 : f32
    %64 = vector.broadcast %cst_35 : f32 to vector<8x36xf32>
    %65 = arith.mulf %64, %61 : vector<8x36xf32>
    %66 = arith.mulf %65, %61 : vector<8x36xf32>
    %67 = arith.mulf %66, %61 : vector<8x36xf32>
    %68 = arith.addf %61, %67 : vector<8x36xf32>
    %cst_36 = arith.constant 0.797884583 : f32
    %69 = vector.broadcast %cst_36 : f32 to vector<8x36xf32>
    %70 = arith.mulf %69, %68 : vector<8x36xf32>
    %71 = math.tanh %70 : vector<8x36xf32>
    %cst_37 = arith.constant 1.000000e+00 : f32
    %72 = vector.broadcast %cst_37 : f32 to vector<8x36xf32>
    %73 = arith.addf %72, %71 : vector<8x36xf32>
    %74 = arith.mulf %63, %73 : vector<8x36xf32>
    %c8 = arith.constant 8 : index
    %c0_38 = arith.constant 0 : index
    %75 = vector.load %arg17[%c8, %c0_38] : memref<32x36xf32, #tpu.memory_space<vmem>>, vector<8x36xf32>
    tpu.vector_store %arg17[%c8, %c0_38], %74 {strides = array<i32>} : memref<32x36xf32, #tpu.memory_space<vmem>>, vector<8x36xf32>,
    %c0_39 = arith.constant 0 : index
    %c0_40 = arith.constant 0 : index
    %76 = vector.load %arg17[%c0_39, %c0_40] : memref<32x36xf32, #tpu.memory_space<vmem>>, vector<16x36xf32>
    %77 = arith.truncf %76 : vector<16x36xf32> to vector<16x36xbf16>
    %cst_41 = arith.constant dense<0.000000e+00> : vector<16x16xf32>
    %78 = tpu.matmul %77, %7, %cst_41 {dimension_numbers = #tpu.dot_dimension_numbers<[1], [0], [0], [1], [0, 0, 1, 1], [], []>} : vector<16x36xbf16>, vector<36x16xbf16>, vector<16x16xf32> -> vector<16x16xf32>
    %79 = arith.truncf %78 : vector<16x16xf32> to vector<16x16xbf16>
    %80 = vector.extract_strided_slice %79 {offsets = [0, 0], sizes = [16, 4], strides = [1, 1]} : vector<16x16xbf16> to vector<16x4xbf16>
    %c0_42 = arith.constant 0 : index
    %c0_43 = arith.constant 0 : index
    %c0_44 = arith.constant 0 : index
    %81 = vector.load %arg9[%c0_42, %c0_43, %c0_44] : memref<4x32x16xbf16, #tpu.memory_space<vmem>>, vector<1x32x16xbf16>
    %82 = vector.shape_cast %81 : vector<1x32x16xbf16> to vector<32x16xbf16>
    %cst_45 = arith.constant dense<0.000000e+00> : vector<32x4xf32>
    %83 = tpu.matmul %82, %80, %cst_45 {dimension_numbers = #tpu.dot_dimension_numbers<[1], [0], [0], [1], [0, 0, 1, 1], [], []>} : vector<32x16xbf16>, vector<16x4xbf16>, vector<32x4xf32> -> vector<32x4xf32>
    %84 = vector.extract_strided_slice %83 {offsets = [0, 0], sizes = [16, 2], strides = [1, 1]} : vector<32x4xf32> to vector<16x2xf32>
    %85 = vector.extract_strided_slice %83 {offsets = [16, 2], sizes = [16, 2], strides = [1, 1]} : vector<32x4xf32> to vector<16x2xf32>
    %86 = arith.subf %84, %85 : vector<16x2xf32>
    %87 = vector.extract_strided_slice %83 {offsets = [16, 0], sizes = [16, 2], strides = [1, 1]} : vector<32x4xf32> to vector<16x2xf32>
    %88 = vector.extract_strided_slice %83 {offsets = [0, 2], sizes = [16, 2], strides = [1, 1]} : vector<32x4xf32> to vector<16x2xf32>
    %89 = arith.addf %87, %88 : vector<16x2xf32>
    %90 = vector.extract_strided_slice %79 {offsets = [0, 4], sizes = [16, 4], strides = [1, 1]} : vector<16x16xbf16> to vector<16x4xbf16>
    %c1_46 = arith.constant 1 : index
    %c0_47 = arith.constant 0 : index
    %c0_48 = arith.constant 0 : index
    %91 = vector.load %arg9[%c1_46, %c0_47, %c0_48] : memref<4x32x16xbf16, #tpu.memory_space<vmem>>, vector<1x32x16xbf16>
    %92 = vector.shape_cast %91 : vector<1x32x16xbf16> to vector<32x16xbf16>
    %cst_49 = arith.constant dense<0.000000e+00> : vector<32x4xf32>
    %93 = tpu.matmul %92, %90, %cst_49 {dimension_numbers = #tpu.dot_dimension_numbers<[1], [0], [0], [1], [0, 0, 1, 1], [], []>} : vector<32x16xbf16>, vector<16x4xbf16>, vector<32x4xf32> -> vector<32x4xf32>
    %94 = vector.extract_strided_slice %93 {offsets = [0, 0], sizes = [16, 2], strides = [1, 1]} : vector<32x4xf32> to vector<16x2xf32>
    %95 = vector.extract_strided_slice %93 {offsets = [16, 2], sizes = [16, 2], strides = [1, 1]} : vector<32x4xf32> to vector<16x2xf32>
    %96 = arith.subf %94, %95 : vector<16x2xf32>
    %97 = vector.extract_strided_slice %93 {offsets = [16, 0], sizes = [16, 2], strides = [1, 1]} : vector<32x4xf32> to vector<16x2xf32>
    %98 = vector.extract_strided_slice %93 {offsets = [0, 2], sizes = [16, 2], strides = [1, 1]} : vector<32x4xf32> to vector<16x2xf32>
    %99 = arith.addf %97, %98 : vector<16x2xf32>
    %100 = vector.extract_strided_slice %79 {offsets = [0, 8], sizes = [16, 4], strides = [1, 1]} : vector<16x16xbf16> to vector<16x4xbf16>
    %c2_50 = arith.constant 2 : index
    %c0_51 = arith.constant 0 : index
    %c0_52 = arith.constant 0 : index
    %101 = vector.load %arg9[%c2_50, %c0_51, %c0_52] : memref<4x32x16xbf16, #tpu.memory_space<vmem>>, vector<1x32x16xbf16>
    %102 = vector.shape_cast %101 : vector<1x32x16xbf16> to vector<32x16xbf16>
    %cst_53 = arith.constant dense<0.000000e+00> : vector<32x4xf32>
    %103 = tpu.matmul %102, %100, %cst_53 {dimension_numbers = #tpu.dot_dimension_numbers<[1], [0], [0], [1], [0, 0, 1, 1], [], []>} : vector<32x16xbf16>, vector<16x4xbf16>, vector<32x4xf32> -> vector<32x4xf32>
    %104 = vector.extract_strided_slice %103 {offsets = [0, 0], sizes = [16, 2], strides = [1, 1]} : vector<32x4xf32> to vector<16x2xf32>
    %105 = vector.extract_strided_slice %103 {offsets = [16, 2], sizes = [16, 2], strides = [1, 1]} : vector<32x4xf32> to vector<16x2xf32>
    %106 = arith.subf %104, %105 : vector<16x2xf32>
    %107 = vector.extract_strided_slice %103 {offsets = [16, 0], sizes = [16, 2], strides = [1, 1]} : vector<32x4xf32> to vector<16x2xf32>
    %108 = vector.extract_strided_slice %103 {offsets = [0, 2], sizes = [16, 2], strides = [1, 1]} : vector<32x4xf32> to vector<16x2xf32>
    %109 = arith.addf %107, %108 : vector<16x2xf32>
    %110 = vector.extract_strided_slice %79 {offsets = [0, 12], sizes = [16, 4], strides = [1, 1]} : vector<16x16xbf16> to vector<16x4xbf16>
    %c3_54 = arith.constant 3 : index
    %c0_55 = arith.constant 0 : index
    %c0_56 = arith.constant 0 : index
    %111 = vector.load %arg9[%c3_54, %c0_55, %c0_56] : memref<4x32x16xbf16, #tpu.memory_space<vmem>>, vector<1x32x16xbf16>
    %112 = vector.shape_cast %111 : vector<1x32x16xbf16> to vector<32x16xbf16>
    %cst_57 = arith.constant dense<0.000000e+00> : vector<32x4xf32>
    %113 = tpu.matmul %112, %110, %cst_57 {dimension_numbers = #tpu.dot_dimension_numbers<[1], [0], [0], [1], [0, 0, 1, 1], [], []>} : vector<32x16xbf16>, vector<16x4xbf16>, vector<32x4xf32> -> vector<32x4xf32>
    %114 = vector.extract_strided_slice %113 {offsets = [0, 0], sizes = [16, 2], strides = [1, 1]} : vector<32x4xf32> to vector<16x2xf32>
    %115 = vector.extract_strided_slice %113 {offsets = [16, 2], sizes = [16, 2], strides = [1, 1]} : vector<32x4xf32> to vector<16x2xf32>
    %116 = arith.subf %114, %115 : vector<16x2xf32>
    %117 = vector.extract_strided_slice %113 {offsets = [16, 0], sizes = [16, 2], strides = [1, 1]} : vector<32x4xf32> to vector<16x2xf32>
    %118 = vector.extract_strided_slice %113 {offsets = [0, 2], sizes = [16, 2], strides = [1, 1]} : vector<32x4xf32> to vector<16x2xf32>
    %119 = arith.addf %117, %118 : vector<16x2xf32>
    %120 = tpu.concatenate %86, %89, %96, %99, %106, %109, %116, %119 in 1 : vector<16x2xf32>, vector<16x2xf32>, vector<16x2xf32>, vector<16x2xf32>, vector<16x2xf32>, vector<16x2xf32>, vector<16x2xf32>, vector<16x2xf32> -> vector<16x16xf32>
    %121 = arith.truncf %120 : vector<16x16xf32> to vector<16x16xbf16>
    %cst_58 = arith.constant dense<0.000000e+00> : vector<16x36xf32>
    %122 = tpu.matmul %121, %8, %cst_58 {dimension_numbers = #tpu.dot_dimension_numbers<[1], [0], [0], [1], [0, 0, 1, 1], [], []>} : vector<16x16xbf16>, vector<16x36xbf16>, vector<16x36xf32> -> vector<16x36xf32>
    %c0_59 = arith.constant 0 : index
    %c0_60 = arith.constant 0 : index
    %123 = vector.load %arg10[%c0_59, %c0_60] : memref<16x16xbf16, #tpu.memory_space<vmem>>, vector<16x16xbf16>
    %cst_61 = arith.constant dense<0.000000e+00> : vector<16x36xf32>
    %124 = tpu.matmul %123, %77, %cst_61 {dimension_numbers = #tpu.dot_dimension_numbers<[1], [0], [0], [1], [0, 0, 1, 1], [], []>} : vector<16x16xbf16>, vector<16x36xbf16>, vector<16x36xf32> -> vector<16x36xf32>
    %125 = arith.addf %122, %124 : vector<16x36xf32>
    %c0_62 = arith.constant 0 : index
    %c0_63 = arith.constant 0 : index
    %126 = vector.load %arg11[%c0_62, %c0_63] : memref<16x1xf32, #tpu.memory_space<vmem>>, vector<16x1xf32>
    %127 = vector.broadcast %126 : vector<16x1xf32> to vector<16x36xf32>
    %128 = arith.addf %125, %127 : vector<16x36xf32>
    %cst_64 = arith.constant 5.000000e-01 : f32
    %129 = vector.broadcast %cst_64 : f32 to vector<16x36xf32>
    %130 = arith.mulf %129, %128 : vector<16x36xf32>
    %cst_65 = arith.constant 4.471500e-02 : f32
    %131 = vector.broadcast %cst_65 : f32 to vector<16x36xf32>
    %132 = arith.mulf %131, %128 : vector<16x36xf32>
    %133 = arith.mulf %132, %128 : vector<16x36xf32>
    %134 = arith.mulf %133, %128 : vector<16x36xf32>
    %135 = arith.addf %128, %134 : vector<16x36xf32>
    %cst_66 = arith.constant 0.797884583 : f32
    %136 = vector.broadcast %cst_66 : f32 to vector<16x36xf32>
    %137 = arith.mulf %136, %135 : vector<16x36xf32>
    %138 = math.tanh %137 : vector<16x36xf32>
    %cst_67 = arith.constant 1.000000e+00 : f32
    %139 = vector.broadcast %cst_67 : f32 to vector<16x36xf32>
    %140 = arith.addf %139, %138 : vector<16x36xf32>
    %141 = arith.mulf %130, %140 : vector<16x36xf32>
    %c16 = arith.constant 16 : index
    %c0_68 = arith.constant 0 : index
    %142 = vector.load %arg17[%c16, %c0_68] : memref<32x36xf32, #tpu.memory_space<vmem>>, vector<16x36xf32>
    tpu.vector_store %arg17[%c16, %c0_68], %141 {strides = array<i32>} : memref<32x36xf32, #tpu.memory_space<vmem>>, vector<16x36xf32>,
    %c0_69 = arith.constant 0 : index
    %c0_70 = arith.constant 0 : index
    %143 = vector.load %arg17[%c0_69, %c0_70] : memref<32x36xf32, #tpu.memory_space<vmem>>, vector<32x36xf32>
    %144 = arith.truncf %143 : vector<32x36xf32> to vector<32x36xbf16>
    %c0_71 = arith.constant 0 : index
    %c0_72 = arith.constant 0 : index
    %145 = vector.load %arg12[%c0_71, %c0_72] : memref<128x32xbf16, #tpu.memory_space<vmem>>, vector<128x32xbf16>
    %cst_73 = arith.constant dense<0.000000e+00> : vector<128x36xf32>
    %146 = tpu.matmul %145, %144, %cst_73 {dimension_numbers = #tpu.dot_dimension_numbers<[1], [0], [0], [1], [0, 0, 1, 1], [], []>} : vector<128x32xbf16>, vector<32x36xbf16>, vector<128x36xf32> -> vector<128x36xf32>
    %c0_74 = arith.constant 0 : index
    %c0_75 = arith.constant 0 : index
    %147 = vector.load %arg13[%c0_74, %c0_75] : memref<128x1xf32, #tpu.memory_space<vmem>>, vector<128x1xf32>
    %148 = vector.broadcast %147 : vector<128x1xf32> to vector<128x36xf32>
    %149 = arith.addf %146, %148 : vector<128x36xf32>
    %cst_76 = arith.constant 5.000000e-01 : f32
    %150 = vector.broadcast %cst_76 : f32 to vector<128x36xf32>
    %151 = arith.mulf %150, %149 : vector<128x36xf32>
    %cst_77 = arith.constant 4.471500e-02 : f32
    %152 = vector.broadcast %cst_77 : f32 to vector<128x36xf32>
    %153 = arith.mulf %152, %149 : vector<128x36xf32>
    %154 = arith.mulf %153, %149 : vector<128x36xf32>
    %155 = arith.mulf %154, %149 : vector<128x36xf32>
    %156 = arith.addf %149, %155 : vector<128x36xf32>
    %cst_78 = arith.constant 0.797884583 : f32
    %157 = vector.broadcast %cst_78 : f32 to vector<128x36xf32>
    %158 = arith.mulf %157, %156 : vector<128x36xf32>
    %159 = math.tanh %158 : vector<128x36xf32>
    %cst_79 = arith.constant 1.000000e+00 : f32
    %160 = vector.broadcast %cst_79 : f32 to vector<128x36xf32>
    %161 = arith.addf %160, %159 : vector<128x36xf32>
    %162 = arith.mulf %151, %161 : vector<128x36xf32>
    %c0_80 = arith.constant 0 : index
    %c0_81 = arith.constant 0 : index
    %163 = vector.load %arg14[%c0_80, %c0_81] : memref<128x1xf32, #tpu.memory_space<vmem>>, vector<128x1xf32>
    %164 = vector.broadcast %163 : vector<128x1xf32> to vector<128x36xf32>
    %165 = arith.mulf %162, %164 : vector<128x36xf32>
    %cst_82 = arith.constant dense<0.000000e+00> : vector<36xf32>
    %166 = vector.multi_reduction <add>, %165, %cst_82 [0] : vector<128x36xf32> to vector<36xf32>
    %167 = vector.shape_cast %166 : vector<36xf32> to vector<1x36xf32>
    %c0_83 = arith.constant 0 : index
    %c0_84 = arith.constant 0 : index
    %168 = vector.load %arg15[%c0_83, %c0_84] : memref<1x1xf32, #tpu.memory_space<vmem>>, vector<1x1xf32>
    %169 = vector.broadcast %168 : vector<1x1xf32> to vector<1x36xf32>
    %170 = arith.addf %167, %169 : vector<1x36xf32>
    %c0_85 = arith.constant 0 : index
    %c0_86 = arith.constant 0 : index
    %c0_87 = arith.constant 0 : index
    %171 = vector.load %arg16[%c0_85, %c0_86, %c0_87] : memref<1x1x36xf32, #tpu.memory_space<vmem>>, vector<1x1x36xf32>
    %172 = vector.shape_cast %171 : vector<1x1x36xf32> to vector<1x36xf32>
    %173 = vector.shape_cast %170 : vector<1x36xf32> to vector<1x1x36xf32>
    tpu.vector_store %arg16[%c0_85, %c0_86, %c0_87], %173 {strides = array<i32>} : memref<1x1x36xf32, #tpu.memory_space<vmem>>, vector<1x1x36xf32>,
    return
  }
  func.func @transform_0(%arg0: i32) -> (i32, i32, i32) {
    %c0_i32 = arith.constant 0 : i32
    %c0_i32_0 = arith.constant 0 : i32
    %c0_i32_1 = arith.constant 0 : i32
    return %arg0, %c0_i32, %c0_i32_0 : i32, i32, i32
  }
  func.func @transform_1(%arg0: i32) -> (i32, i32) {
    %c0_i32 = arith.constant 0 : i32
    %c0_i32_0 = arith.constant 0 : i32
    %c0_i32_1 = arith.constant 0 : i32
    return %c0_i32, %c0_i32_0 : i32, i32
  }
  func.func @transform_2(%arg0: i32) -> (i32, i32) {
    %c0_i32 = arith.constant 0 : i32
    %c0_i32_0 = arith.constant 0 : i32
    %c0_i32_1 = arith.constant 0 : i32
    return %c0_i32, %c0_i32_0 : i32, i32
  }
  func.func @transform_3(%arg0: i32) -> (i32, i32) {
    %c0_i32 = arith.constant 0 : i32
    %c0_i32_0 = arith.constant 0 : i32
    %c0_i32_1 = arith.constant 0 : i32
    return %c0_i32, %c0_i32_0 : i32, i32
  }
  func.func @transform_4(%arg0: i32) -> (i32, i32) {
    %c0_i32 = arith.constant 0 : i32
    %c0_i32_0 = arith.constant 0 : i32
    %c0_i32_1 = arith.constant 0 : i32
    return %c0_i32, %c0_i32_0 : i32, i32
  }
  func.func @transform_5(%arg0: i32) -> (i32, i32, i32) {
    %c0_i32 = arith.constant 0 : i32
    %c0_i32_0 = arith.constant 0 : i32
    %c0_i32_1 = arith.constant 0 : i32
    %c0_i32_2 = arith.constant 0 : i32
    return %c0_i32, %c0_i32_0, %c0_i32_1 : i32, i32, i32
  }
  func.func @transform_6(%arg0: i32) -> (i32, i32) {
    %c0_i32 = arith.constant 0 : i32
    %c0_i32_0 = arith.constant 0 : i32
    %c0_i32_1 = arith.constant 0 : i32
    return %c0_i32, %c0_i32_0 : i32, i32
  }
  func.func @transform_7(%arg0: i32) -> (i32, i32) {
    %c0_i32 = arith.constant 0 : i32
    %c0_i32_0 = arith.constant 0 : i32
    %c0_i32_1 = arith.constant 0 : i32
    return %c0_i32, %c0_i32_0 : i32, i32
  }
  func.func @transform_8(%arg0: i32) -> (i32, i32, i32) {
    %c0_i32 = arith.constant 0 : i32
    %c0_i32_0 = arith.constant 0 : i32
    %c0_i32_1 = arith.constant 0 : i32
    %c0_i32_2 = arith.constant 0 : i32
    return %c0_i32, %c0_i32_0, %c0_i32_1 : i32, i32, i32
  }
  func.func @transform_9(%arg0: i32) -> (i32, i32) {
    %c0_i32 = arith.constant 0 : i32
    %c0_i32_0 = arith.constant 0 : i32
    %c0_i32_1 = arith.constant 0 : i32
    return %c0_i32, %c0_i32_0 : i32, i32
  }
  func.func @transform_10(%arg0: i32) -> (i32, i32) {
    %c0_i32 = arith.constant 0 : i32
    %c0_i32_0 = arith.constant 0 : i32
    %c0_i32_1 = arith.constant 0 : i32
    return %c0_i32, %c0_i32_0 : i32, i32
  }
  func.func @transform_11(%arg0: i32) -> (i32, i32) {
    %c0_i32 = arith.constant 0 : i32
    %c0_i32_0 = arith.constant 0 : i32
    %c0_i32_1 = arith.constant 0 : i32
    return %c0_i32, %c0_i32_0 : i32, i32
  }
  func.func @transform_12(%arg0: i32) -> (i32, i32) {
    %c0_i32 = arith.constant 0 : i32
    %c0_i32_0 = arith.constant 0 : i32
    %c0_i32_1 = arith.constant 0 : i32
    return %c0_i32, %c0_i32_0 : i32, i32
  }
  func.func @transform_13(%arg0: i32) -> (i32, i32) {
    %c0_i32 = arith.constant 0 : i32
    %c0_i32_0 = arith.constant 0 : i32
    %c0_i32_1 = arith.constant 0 : i32
    return %c0_i32, %c0_i32_0 : i32, i32
  }
  func.func @transform_14(%arg0: i32) -> (i32, i32) {
    %c0_i32 = arith.constant 0 : i32
    %c0_i32_0 = arith.constant 0 : i32
    %c0_i32_1 = arith.constant 0 : i32
    return %c0_i32, %c0_i32_0 : i32, i32
  }
  func.func @transform_15(%arg0: i32) -> (i32, i32, i32) {
    %c0_i32 = arith.constant 0 : i32
    %c0_i32_0 = arith.constant 0 : i32
    %c0_i32_1 = arith.constant 0 : i32
    return %arg0, %c0_i32, %c0_i32_0 : i32, i32, i32
  }
}

</mosaic_0001>

<llo_original>
// kernel: dpfno1d_forward.1
$region0: #{dpfno1d_forward.1}
  #allocation0 [shape = 'u32[]', space=smem, size = 0x4, offset = 0x4, fixed_abs, tag = 'smem constant byte address 0x4 - core index']
  #allocation1 [shape = 'u32[144,128]{1,0:T(1,128)}', space=vmem, size = 0x12000, scoped, tag = 'internal scratch']
  #allocation2 [shape = 'f32[32,36]{1,0:T(8,128)}', space=vmem, size = 0x4000, scoped, tag = 'scratch operand']
  #allocation3 [shape = 'f32[1,1]{1,0:T(1,128)S(1)}', space=vmem, size = 0x200, scoped, tag = 'scoped memory for dpfno1d_forward.1']
  %s0 = inlined_call_operand.vmem [shape: bf16[1,8,36], index: 0, kind: input, shape index: {}]
  %s1 = inlined_call_operand.vmem [shape: bf16[8,8], index: 1, kind: input, shape index: {}]
  %s2 = inlined_call_operand.vmem [shape: f32[8,36], index: 2, kind: input, shape index: {}]
  %s3 = inlined_call_operand.vmem [shape: bf16[36,16], index: 3, kind: input, shape index: {}]
  %s4 = inlined_call_operand.vmem [shape: bf16[16,36], index: 4, kind: input, shape index: {}]
  %s5 = inlined_call_operand.vmem [shape: bf16[4,16,8], index: 5, kind: input, shape index: {}]
  %s6 = inlined_call_operand.vmem [shape: bf16[8,8], index: 6, kind: input, shape index: {}]
  %s7 = inlined_call_operand.vmem [shape: f32[8,1], index: 7, kind: input, shape index: {}]
  %s8 = inlined_call_operand.vmem [shape: bf16[4,32,16], index: 8, kind: input, shape index: {}]
  %s9 = inlined_call_operand.vmem [shape: bf16[16,16], index: 9, kind: input, shape index: {}]
  %s10 = inlined_call_operand.vmem [shape: f32[16,1], index: 10, kind: input, shape index: {}]
  %s11 = inlined_call_operand.vmem [shape: bf16[128,32], index: 11, kind: input, shape index: {}]
  %s12 = inlined_call_operand.vmem [shape: f32[128,1], index: 12, kind: input, shape index: {}]
  %s13 = inlined_call_operand.vmem [shape: f32[128,1], index: 13, kind: input, shape index: {}]
  %s14 = inlined_call_operand.<no memory space> [shape: f32[1,1], index: 14, kind: input, shape index: {}]
  %s15 = inlined_call_operand.vmem [shape: f32[1,1,36], index: 15, kind: output, shape index: {}]
  %s16 = sld [smem:[#allocation0]]
  $region70: #{dpfno1d_forward.1} parent=0
    _
  %s18 = ssub.s32 1, %s16
  %s19 = scalar_select 0, %s18, %s16
  %v20 = vstv %s14
  %21 = vst [vmem:[#allocation3] sm:$0x1] %v20
  // Predicated region
  $region2: #{dpfno1d_forward.1} parent=0 // pred_check
    _
  $region3: #{dpfno1d_forward.1} parent=0 // pred_check_branch
    %23 = sbr.rel (0) target = $region5
  $region4: #{dpfno1d_forward.1} parent=0 // pred_region
    _
  $region5: #{dpfno1d_forward.1} parent=0 // pred_fallthru
    _
  // Predicated region
  $region6: #{dpfno1d_forward.1} parent=0 // pred_check
    _
  $region7: #{dpfno1d_forward.1} parent=0 // pred_check_branch
    %25 = sbr.rel (0) target = $region9
  $region8: #{dpfno1d_forward.1} parent=0 // pred_region
    _
  $region9: #{dpfno1d_forward.1} parent=0 // pred_fallthru
    _
  // Predicated region
  $region10: #{dpfno1d_forward.1} parent=0 // pred_check
    _
  $region11: #{dpfno1d_forward.1} parent=0 // pred_check_branch
    %27 = sbr.rel (0) target = $region13
  $region12: #{dpfno1d_forward.1} parent=0 // pred_region
    _
  $region13: #{dpfno1d_forward.1} parent=0 // pred_fallthru
    _
  // Predicated region
  $region14: #{dpfno1d_forward.1} parent=0 // pred_check
    _
  $region15: #{dpfno1d_forward.1} parent=0 // pred_check_branch
    %29 = sbr.rel (0) target = $region17
  $region16: #{dpfno1d_forward.1} parent=0 // pred_region
    _
  $region17: #{dpfno1d_forward.1} parent=0 // pred_fallthru
    _
  // Predicated region
  $region18: #{dpfno1d_forward.1} parent=0 // pred_check
    _
  $region19: #{dpfno1d_forward.1} parent=0 // pred_check_branch
    %31 = sbr.rel (0) target = $region21
  $region20: #{dpfno1d_forward.1} parent=0 // pred_region
    _
  $region21: #{dpfno1d_forward.1} parent=0 // pred_fallthru
    _
  // Predicated region
  $region22: #{dpfno1d_forward.1} parent=0 // pred_check
    _
  $region23: #{dpfno1d_forward.1} parent=0 // pred_check_branch
    %33 = sbr.rel (0) target = $region25
  $region24: #{dpfno1d_forward.1} parent=0 // pred_region
    _
  $region25: #{dpfno1d_forward.1} parent=0 // pred_fallthru
    _
  // Predicated region
  $region26: #{dpfno1d_forward.1} parent=0 // pred_check
    _
  $region27: #{dpfno1d_forward.1} parent=0 // pred_check_branch
    %35 = sbr.rel (0) target = $region29
  $region28: #{dpfno1d_forward.1} parent=0 // pred_region
    _
  $region29: #{dpfno1d_forward.1} parent=0 // pred_fallthru
    _
  // Predicated region
  $region30: #{dpfno1d_forward.1} parent=0 // pred_check
    _
  $region31: #{dpfno1d_forward.1} parent=0 // pred_check_branch
    %37 = sbr.rel (0) target = $region33
  $region32: #{dpfno1d_forward.1} parent=0 // pred_region
    _
  $region33: #{dpfno1d_forward.1} parent=0 // pred_fallthru
    _
  // Predicated region
  $region34: #{dpfno1d_forward.1} parent=0 // pred_check
    _
  $region35: #{dpfno1d_forward.1} parent=0 // pred_check_branch
    %39 = sbr.rel (0) target = $region37
  $region36: #{dpfno1d_forward.1} parent=0 // pred_region
    _
  $region37: #{dpfno1d_forward.1} parent=0 // pred_fallthru
    _
  // Predicated region
  $region38: #{dpfno1d_forward.1} parent=0 // pred_check
    _
  $region39: #{dpfno1d_forward.1} parent=0 // pred_check_branch
    %41 = sbr.rel (0) target = $region41
  $region40: #{dpfno1d_forward.1} parent=0 // pred_region
    _
  $region41: #{dpfno1d_forward.1} parent=0 // pred_fallthru
    _
  // Predicated region
  $region42: #{dpfno1d_forward.1} parent=0 // pred_check
    _
  $region43: #{dpfno1d_forward.1} parent=0 // pred_check_branch
    %43 = sbr.rel (0) target = $region45
  $region44: #{dpfno1d_forward.1} parent=0 // pred_region
    _
  $region45: #{dpfno1d_forward.1} parent=0 // pred_fallthru
    _
  // Predicated region
  $region46: #{dpfno1d_forward.1} parent=0 // pred_check
    _
  $region47: #{dpfno1d_forward.1} parent=0 // pred_check_branch
    %45 = sbr.rel (0) target = $region49
  $region48: #{dpfno1d_forward.1} parent=0 // pred_region
    _
  $region49: #{dpfno1d_forward.1} parent=0 // pred_fallthru
    _
  // Predicated region
  $region50: #{dpfno1d_forward.1} parent=0 // pred_check
    _
  $region51: #{dpfno1d_forward.1} parent=0 // pred_check_branch
    %47 = sbr.rel (0) target = $region53
  $region52: #{dpfno1d_forward.1} parent=0 // pred_region
    _
  $region53: #{dpfno1d_forward.1} parent=0 // pred_fallthru
    _
  // Predicated region
  $region54: #{dpfno1d_forward.1} parent=0 // pred_check
    _
  $region55: #{dpfno1d_forward.1} parent=0 // pred_check_branch
    %49 = sbr.rel (0) target = $region57
  $region56: #{dpfno1d_forward.1} parent=0 // pred_region
    _
  $region57: #{dpfno1d_forward.1} parent=0 // pred_fallthru
    _
  // Predicated region
  $region58: #{dpfno1d_forward.1} parent=0 // pred_check
    _
  $region59: #{dpfno1d_forward.1} parent=0 // pred_check_branch
    %51 = sbr.rel (0) target = $region61
  $region60: #{dpfno1d_forward.1} parent=0 // pred_region
    _
  $region61: #{dpfno1d_forward.1} parent=0 // pred_fallthru
    _
  %v53 = vld [vmem:[%s1] sm:$0xf]
  %v54 = vld [vmem:[%s0] sm:$0xf]
  %v55 = vld [vmem:[%s2] sm:$0xff]
  %vm56 = vcmask 64512
  %v58 = vsel %vm56, %v53, 0
  %vm60 = vcmask 1043456
  %v62 = vsel %vm60, %v54, 0
  %64 = vmatprep.subr.bf16.mxu0 0
  %65 = vmatpush1.bf16.msra.mxu0 %v62
  %66 = vmatprep.subr.bf16.mxu0 0
  %67 = vmatpush1.bf16.msra.mxu0 0
  %68 = vmatprep.subr.bf16.mxu0 0
  %69 = vmatpush1.bf16.msra.mxu0 0
  %70 = vmatprep.subr.bf16.mxu0 0
  %71 = vmatpush1.bf16.msra.mxu0 0
  %72 = vmatprep.subr.bf16.mxu0 0
  %73 = vmatpush1.bf16.msra.mxu0 0
  %74 = vmatprep.subr.bf16.mxu0 0
  %75 = vmatpush1.bf16.msra.mxu0 0
  %76 = vmatprep.subr.bf16.mxu0 0
  %77 = vmatpush1.bf16.msra.mxu0 0
  %78 = vmatprep.subr.bf16.mxu0 0
  %79 = vmatpush1.bf16.msra.mxu0 0
  %80 = vmatprep.subr.bf16.mxu0 0
  %81 = vmatpush1.bf16.msra.mxu0 0
  %82 = vmatprep.subr.bf16.mxu0 0
  %83 = vmatpush1.bf16.msra.mxu0 0
  %84 = vmatprep.subr.bf16.mxu0 0
  %85 = vmatpush1.bf16.msra.mxu0 0
  %86 = vmatprep.subr.bf16.mxu0 0
  %87 = vmatpush1.bf16.msra.mxu0 0
  %88 = vmatprep.subr.bf16.mxu0 0
  %89 = vmatpush1.bf16.msra.mxu0 0
  %90 = vmatprep.subr.bf16.mxu0 0
  %91 = vmatpush1.bf16.msra.mxu0 0
  %92 = vmatprep.subr.bf16.mxu0 0
  %93 = vmatpush1.bf16.msra.mxu0 0
  %94 = vmatprep.subr.bf16.mxu0 0
  %95 = vmatpush1.bf16.msra.mxu0 0
  %96 = vmatprep.mubr.bf16.mxu0 0
  %97 = vmatmul.mubr.bf16.gmra.mrb[0].mxu0 %v58
  %v98 = vpop.f32.mrb[0].mxu0
  %v99 = vadd.f32 %v55, %v98
  %v100 = vpop.f32.mrb[0].mxu0
  %v101 = vpop.f32.mrb[0].mxu0
  %v102 = vpop.f32.mrb[0].mxu0
  %103 = vdwg.mxu0
  %vm104 = vcmask 293888
  %105 = vst.msk [vmem:[#allocation2] sm:$0xff] %vm104, %v99
  %v106 = vld [vmem:[%s3] sm:$0xf]
  %v107 = vld [vmem:[%s3 + $0x4] sm:$0xf]
  %v108 = vld [vmem:[%s3 + $0x8] sm:$0xf]
  %v109 = vld [vmem:[%s3 + $0xc] sm:$0xf]
  %v110 = vld [vmem:[%s3 + $0x10] sm:$0x3]
  %v111 = vld [vmem:[%s4] sm:$0xf]
  %v112 = vld [vmem:[%s4 + $0x4] sm:$0xf]
  %v113 = vld [vmem:[#allocation2] sm:$0xff]
  %v114 = vpack.c.bf16 %v113, %v113
  %v120 = vunpack.c.l.b16 %v106
  %v121 = vunpack.c.l.b16 %v107
  %v122 = vunpack.c.l.b16 %v108
  %v123 = vunpack.c.l.b16 %v109
  %v124 = vunpack.c.l.b16 %v110
  %v125 = vpack.c.b16 %v121, %v120
  %v126 = vpack.c.b16 %v123, %v122
  %v127 = vpack.c.b16 %v124, %v124
  %v131 = vsel %vm104, %v114, 0
  %vm133 = vcmask 1041408
  %v135 = vsel %vm133, %v127, 0
  %137 = vmatprep.subr.bf16.mxu0 0
  %138 = vmatpush1.bf16.msra.mxu0 %v125
  %139 = vmatprep.subr.bf16.mxu0 0
  %140 = vmatpush1.bf16.msra.mxu0 %v126
  %141 = vmatprep.subr.bf16.mxu0 0
  %142 = vmatpush1.bf16.msra.mxu0 %v135
  %143 = vmatprep.subr.bf16.mxu0 0
  %144 = vmatpush1.bf16.msra.mxu0 0
  %145 = vmatprep.subr.bf16.mxu0 0
  %146 = vmatpush1.bf16.msra.mxu0 0
  %147 = vmatprep.subr.bf16.mxu0 0
  %148 = vmatpush1.bf16.msra.mxu0 0
  %149 = vmatprep.subr.bf16.mxu0 0
  %150 = vmatpush1.bf16.msra.mxu0 0
  %151 = vmatprep.subr.bf16.mxu0 0
  %152 = vmatpush1.bf16.msra.mxu0 0
  %153 = vmatprep.subr.bf16.mxu0 0
  %154 = vmatpush1.bf16.msra.mxu0 0
  %155 = vmatprep.subr.bf16.mxu0 0
  %156 = vmatpush1.bf16.msra.mxu0 0
  %157 = vmatprep.subr.bf16.mxu0 0
  %158 = vmatpush1.bf16.msra.mxu0 0
  %159 = vmatprep.subr.bf16.mxu0 0
  %160 = vmatpush1.bf16.msra.mxu0 0
  %161 = vmatprep.subr.bf16.mxu0 0
  %162 = vmatpush1.bf16.msra.mxu0 0
  %163 = vmatprep.subr.bf16.mxu0 0
  %164 = vmatpush1.bf16.msra.mxu0 0
  %165 = vmatprep.subr.bf16.mxu0 0
  %166 = vmatpush1.bf16.msra.mxu0 0
  %167 = vmatprep.subr.bf16.mxu0 0
  %168 = vmatpush1.bf16.msra.mxu0 0
  %169 = vmatprep.mubr.bf16.mxu0 0
  %170 = vmatmul.mubr.bf16.gmra.mrb[0].mxu0 %v131
  %v171 = vpop.f32.mrb[0].mxu0
  %v172 = vadd.f32 0.0, %v171
  %v173 = vpop.f32.mrb[0].mxu0
  %v174 = vpop.f32.mrb[0].mxu0
  %v175 = vpop.f32.mrb[0].mxu0
  %176 = vdwg.mxu0
  %v177 = vpack.c.bf16 %v172, %v172
  %v178 = vld [vmem:[%s5] sm:$0xf]
  %v179 = vld [vmem:[%s5 + $0x4] sm:$0xf]
  %v182 = vunpack.c.l.b16 %v178
  %v183 = vunpack.c.l.b16 %v179
  %v184 = vpack.c.b16 %v183, %v182
  %v186 = vsel %vm56, %v184, 0
  %v189 = vsel %vm60, %v177, 0
  %191 = vmatprep.subr.bf16.mxu0 0
  %192 = vmatpush1.bf16.msra.mxu0 %v189
  %193 = vmatprep.subr.bf16.mxu0 0
  %194 = vmatpush1.bf16.msra.mxu0 0
  %195 = vmatprep.subr.bf16.mxu0 0
  %196 = vmatpush1.bf16.msra.mxu0 0
  %197 = vmatprep.subr.bf16.mxu0 0
  %198 = vmatpush1.bf16.msra.mxu0 0
  %199 = vmatprep.subr.bf16.mxu0 0
  %200 = vmatpush1.bf16.msra.mxu0 0
  %201 = vmatprep.subr.bf16.mxu0 0
  %202 = vmatpush1.bf16.msra.mxu0 0
  %203 = vmatprep.subr.bf16.mxu0 0
  %204 = vmatpush1.bf16.msra.mxu0 0
  %205 = vmatprep.subr.bf16.mxu0 0
  %206 = vmatpush1.bf16.msra.mxu0 0
  %207 = vmatprep.subr.bf16.mxu0 0
  %208 = vmatpush1.bf16.msra.mxu0 0
  %209 = vmatprep.subr.bf16.mxu0 0
  %210 = vmatpush1.bf16.msra.mxu0 0
  %211 = vmatprep.subr.bf16.mxu0 0
  %212 = vmatpush1.bf16.msra.mxu0 0
  %213 = vmatprep.subr.bf16.mxu0 0
  %214 = vmatpush1.bf16.msra.mxu0 0
  %215 = vmatprep.subr.bf16.mxu0 0
  %216 = vmatpush1.bf16.msra.mxu0 0
  %217 = vmatprep.subr.bf16.mxu0 0
  %218 = vmatpush1.bf16.msra.mxu0 0
  %219 = vmatprep.subr.bf16.mxu0 0
  %220 = vmatpush1.bf16.msra.mxu0 0
  %221 = vmatprep.subr.bf16.mxu0 0
  %222 = vmatpush1.bf16.msra.mxu0 0
  %223 = vmatprep.mubr.bf16.mxu0 0
  %224 = vmatmul.mubr.bf16.gmra.mrb[0].mxu0 %v186
  %v225 = vpop.f32.mrb[0].mxu0
  %v226 = vadd.f32 0.0, %v225
  %v227 = vpop.f32.mrb[0].mxu0
  %v228 = vpop.f32.mrb[0].mxu0
  %v229 = vadd.f32 0.0, %v228
  %v230 = vpop.f32.mrb[0].mxu0
  %231 = vdwg.mxu0
  %233 = vrot.lane.b32.xlu0 %v229, 126
  %v234 = vpop.permute.xlu0 %233
  %v236 = vsub.f32 %v226, %v234
  %238 = vrot.lane.b32.xlu0 %v226, 126
  %v239 = vpop.permute.xlu0 %238
  %v241 = vadd.f32 %v229, %v239
  %s242 = scalar_lea.vmem %s5, 8
  %v243 = vld [vmem:[%s242] sm:$0xf]
  %v244 = vld [vmem:[%s242 + $0x4] sm:$0xf]
  %v247 = vunpack.c.l.b16 %v243
  %v248 = vunpack.c.l.b16 %v244
  %v249 = vpack.c.b16 %v248, %v247
  %251 = vrot.lane.b32.xlu0 %v177, 124
  %v252 = vpop.permute.xlu0 %251
  %v254 = vsel %vm56, %v249, 0
  %v257 = vsel %vm60, %v252, 0
  %259 = vmatprep.subr.bf16.mxu0 0
  %260 = vmatpush1.bf16.msra.mxu0 %v257
  %261 = vmatprep.subr.bf16.mxu0 0
  %262 = vmatpush1.bf16.msra.mxu0 0
  %263 = vmatprep.subr.bf16.mxu0 0
  %264 = vmatpush1.bf16.msra.mxu0 0
  %265 = vmatprep.subr.bf16.mxu0 0
  %266 = vmatpush1.bf16.msra.mxu0 0
  %267 = vmatprep.subr.bf16.mxu0 0
  %268 = vmatpush1.bf16.msra.mxu0 0
  %269 = vmatprep.subr.bf16.mxu0 0
  %270 = vmatpush1.bf16.msra.mxu0 0
  %271 = vmatprep.subr.bf16.mxu0 0
  %272 = vmatpush1.bf16.msra.mxu0 0
  %273 = vmatprep.subr.bf16.mxu0 0
  %274 = vmatpush1.bf16.msra.mxu0 0
  %275 = vmatprep.subr.bf16.mxu0 0
  %276 = vmatpush1.bf16.msra.mxu0 0
  %277 = vmatprep.subr.bf16.mxu0 0
  %278 = vmatpush1.bf16.msra.mxu0 0
  %279 = vmatprep.subr.bf16.mxu0 0
  %280 = vmatpush1.bf16.msra.mxu0 0
  %281 = vmatprep.subr.bf16.mxu0 0
  %282 = vmatpush1.bf16.msra.mxu0 0
  %283 = vmatprep.subr.bf16.mxu0 0
  %284 = vmatpush1.bf16.msra.mxu0 0
  %285 = vmatprep.subr.bf16.mxu0 0
  %286 = vmatpush1.bf16.msra.mxu0 0
  %287 = vmatprep.subr.bf16.mxu0 0
  %288 = vmatpush1.bf16.msra.mxu0 0
  %289 = vmatprep.subr.bf16.mxu0 0
  %290 = vmatpush1.bf16.msra.mxu0 0
  %291 = vmatprep.mubr.bf16.mxu0 0
  %292 = vmatmul.mubr.bf16.gmra.mrb[0].mxu0 %v254
  %v293 = vpop.f32.mrb[0].mxu0
  %v294 = vadd.f32 0.0, %v293
  %v295 = vpop.f32.mrb[0].mxu0
  %v296 = vpop.f32.mrb[0].mxu0
  %v297 = vadd.f32 0.0, %v296
  %v298 = vpop.f32.mrb[0].mxu0
  %299 = vdwg.mxu0
  %301 = vrot.lane.b32.xlu0 %v297, 126
  %v302 = vpop.permute.xlu0 %301
  %v304 = vsub.f32 %v294, %v302
  %306 = vrot.lane.b32.xlu0 %v294, 126
  %v307 = vpop.permute.xlu0 %306
  %v309 = vadd.f32 %v297, %v307
  %s310 = scalar_lea.vmem %s5, 16
  %v311 = vld [vmem:[%s310] sm:$0xf]
  %v312 = vld [vmem:[%s310 + $0x4] sm:$0xf]
  %v315 = vunpack.c.l.b16 %v311
  %v316 = vunpack.c.l.b16 %v312
  %v317 = vpack.c.b16 %v316, %v315
  %318 = vrot.lane.b32.xlu0 %v177, 120
  %v319 = vpop.permute.xlu0 %318
  %v321 = vsel %vm56, %v317, 0
  %v324 = vsel %vm60, %v319, 0
  %326 = vmatprep.subr.bf16.mxu0 0
  %327 = vmatpush1.bf16.msra.mxu0 %v324
  %328 = vmatprep.subr.bf16.mxu0 0
  %329 = vmatpush1.bf16.msra.mxu0 0
  %330 = vmatprep.subr.bf16.mxu0 0
  %331 = vmatpush1.bf16.msra.mxu0 0
  %332 = vmatprep.subr.bf16.mxu0 0
  %333 = vmatpush1.bf16.msra.mxu0 0
  %334 = vmatprep.subr.bf16.mxu0 0
  %335 = vmatpush1.bf16.msra.mxu0 0
  %336 = vmatprep.subr.bf16.mxu0 0
  %337 = vmatpush1.bf16.msra.mxu0 0
  %338 = vmatprep.subr.bf16.mxu0 0
  %339 = vmatpush1.bf16.msra.mxu0 0
  %340 = vmatprep.subr.bf16.mxu0 0
  %341 = vmatpush1.bf16.msra.mxu0 0
  %342 = vmatprep.subr.bf16.mxu0 0
  %343 = vmatpush1.bf16.msra.mxu0 0
  %344 = vmatprep.subr.bf16.mxu0 0
  %345 = vmatpush1.bf16.msra.mxu0 0
  %346 = vmatprep.subr.bf16.mxu0 0
  %347 = vmatpush1.bf16.msra.mxu0 0
  %348 = vmatprep.subr.bf16.mxu0 0
  %349 = vmatpush1.bf16.msra.mxu0 0
  %350 = vmatprep.subr.bf16.mxu0 0
  %351 = vmatpush1.bf16.msra.mxu0 0
  %352 = vmatprep.subr.bf16.mxu0 0
  %353 = vmatpush1.bf16.msra.mxu0 0
  %354 = vmatprep.subr.bf16.mxu0 0
  %355 = vmatpush1.bf16.msra.mxu0 0
  %356 = vmatprep.subr.bf16.mxu0 0
  %357 = vmatpush1.bf16.msra.mxu0 0
  %358 = vmatprep.mubr.bf16.mxu0 0
  %359 = vmatmul.mubr.bf16.gmra.mrb[0].mxu0 %v321
  %v360 = vpop.f32.mrb[0].mxu0
  %v361 = vadd.f32 0.0, %v360
  %v362 = vpop.f32.mrb[0].mxu0
  %v363 = vpop.f32.mrb[0].mxu0
  %v364 = vadd.f32 0.0, %v363
  %v365 = vpop.f32.mrb[0].mxu0
  %366 = vdwg.mxu0
  %368 = vrot.lane.b32.xlu0 %v364, 126
  %v369 = vpop.permute.xlu0 %368
  %v371 = vsub.f32 %v361, %v369
  %373 = vrot.lane.b32.xlu0 %v361, 126
  %v374 = vpop.permute.xlu0 %373
  %v376 = vadd.f32 %v364, %v374
  %s377 = scalar_lea.vmem %s5, 24
  %v378 = vld [vmem:[%s377] sm:$0xf]
  %v379 = vld [vmem:[%s377 + $0x4] sm:$0xf]
  %v382 = vunpack.c.l.b16 %v378
  %v383 = vunpack.c.l.b16 %v379
  %v384 = vpack.c.b16 %v383, %v382
  %385 = vrot.lane.b32.xlu0 %v177, 116
  %v386 = vpop.permute.xlu0 %385
  %v388 = vsel %vm56, %v384, 0
  %v391 = vsel %vm60, %v386, 0
  %393 = vmatprep.subr.bf16.mxu0 0
  %394 = vmatpush1.bf16.msra.mxu0 %v391
  %395 = vmatprep.subr.bf16.mxu0 0
  %396 = vmatpush1.bf16.msra.mxu0 0
  %397 = vmatprep.subr.bf16.mxu0 0
  %398 = vmatpush1.bf16.msra.mxu0 0
  %399 = vmatprep.subr.bf16.mxu0 0
  %400 = vmatpush1.bf16.msra.mxu0 0
  %401 = vmatprep.subr.bf16.mxu0 0
  %402 = vmatpush1.bf16.msra.mxu0 0
  %403 = vmatprep.subr.bf16.mxu0 0
  %404 = vmatpush1.bf16.msra.mxu0 0
  %405 = vmatprep.subr.bf16.mxu0 0
  %406 = vmatpush1.bf16.msra.mxu0 0
  %407 = vmatprep.subr.bf16.mxu0 0
  %408 = vmatpush1.bf16.msra.mxu0 0
  %409 = vmatprep.subr.bf16.mxu0 0
  %410 = vmatpush1.bf16.msra.mxu0 0
  %411 = vmatprep.subr.bf16.mxu0 0
  %412 = vmatpush1.bf16.msra.mxu0 0
  %413 = vmatprep.subr.bf16.mxu0 0
  %414 = vmatpush1.bf16.msra.mxu0 0
  %415 = vmatprep.subr.bf16.mxu0 0
  %416 = vmatpush1.bf16.msra.mxu0 0
  %417 = vmatprep.subr.bf16.mxu0 0
  %418 = vmatpush1.bf16.msra.mxu0 0
  %419 = vmatprep.subr.bf16.mxu0 0
  %420 = vmatpush1.bf16.msra.mxu0 0
  %421 = vmatprep.subr.bf16.mxu0 0
  %422 = vmatpush1.bf16.msra.mxu0 0
  %423 = vmatprep.subr.bf16.mxu0 0
  %424 = vmatpush1.bf16.msra.mxu0 0
  %425 = vmatprep.mubr.bf16.mxu0 0
  %426 = vmatmul.mubr.bf16.gmra.mrb[0].mxu0 %v388
  %v427 = vpop.f32.mrb[0].mxu0
  %v428 = vadd.f32 0.0, %v427
  %v429 = vpop.f32.mrb[0].mxu0
  %v430 = vpop.f32.mrb[0].mxu0
  %v431 = vadd.f32 0.0, %v430
  %v432 = vpop.f32.mrb[0].mxu0
  %433 = vdwg.mxu0
  %435 = vrot.lane.b32.xlu0 %v431, 126
  %v436 = vpop.permute.xlu0 %435
  %v438 = vsub.f32 %v428, %v436
  %440 = vrot.lane.b32.xlu0 %v428, 126
  %v441 = vpop.permute.xlu0 %440
  %v443 = vadd.f32 %v431, %v441
  %445 = vrot.lane.b32.xlu0 %v241, 2
  %v446 = vpop.permute.xlu0 %445
  %449 = vrot.lane.b32.xlu0 %v304, 4
  %v450 = vpop.permute.xlu0 %449
  %453 = vrot.lane.b32.xlu0 %v309, 6
  %v454 = vpop.permute.xlu0 %453
  %457 = vrot.lane.b32.xlu0 %v371, 8
  %v458 = vpop.permute.xlu0 %457
  %461 = vrot.lane.b32.xlu0 %v376, 10
  %v462 = vpop.permute.xlu0 %461
  %465 = vrot.lane.b32.xlu0 %v438, 12
  %v466 = vpop.permute.xlu0 %465
  %469 = vrot.lane.b32.xlu0 %v443, 14
  %v470 = vpop.permute.xlu0 %469
  %vm472 = vcmask 15360
  %v473 = vsel %vm472, %v236, %v446
  %vm474 = vcmask 31744
  %v475 = vsel %vm474, %v473, %v450
  %vm476 = vcmask 48128
  %v477 = vsel %vm476, %v475, %v454
  %v478 = vsel %vm56, %v477, %v458
  %vm479 = vcmask 80896
  %v480 = vsel %vm479, %v478, %v462
  %vm481 = vcmask 97280
  %v482 = vsel %vm481, %v480, %v466
  %vm483 = vcmask 113664
  %v484 = vsel %vm483, %v482, %v470
  %v485 = vpack.c.bf16 %v484, %v484
  %v486 = vld [vmem:[%s6] sm:$0xf]
  %v488 = vsel %vm56, %v486, 0
  %v490 = vsel %vm60, %v114, 0
  %492 = vmatprep.subr.bf16.mxu0 0
  %493 = vmatpush1.bf16.msra.mxu0 %v490
  %494 = vmatprep.subr.bf16.mxu0 0
  %495 = vmatpush1.bf16.msra.mxu0 0
  %496 = vmatprep.subr.bf16.mxu0 0
  %497 = vmatpush1.bf16.msra.mxu0 0
  %498 = vmatprep.subr.bf16.mxu0 0
  %499 = vmatpush1.bf16.msra.mxu0 0
  %500 = vmatprep.subr.bf16.mxu0 0
  %501 = vmatpush1.bf16.msra.mxu0 0
  %502 = vmatprep.subr.bf16.mxu0 0
  %503 = vmatpush1.bf16.msra.mxu0 0
  %504 = vmatprep.subr.bf16.mxu0 0
  %505 = vmatpush1.bf16.msra.mxu0 0
  %506 = vmatprep.subr.bf16.mxu0 0
  %507 = vmatpush1.bf16.msra.mxu0 0
  %508 = vmatprep.subr.bf16.mxu0 0
  %509 = vmatpush1.bf16.msra.mxu0 0
  %510 = vmatprep.subr.bf16.mxu0 0
  %511 = vmatpush1.bf16.msra.mxu0 0
  %512 = vmatprep.subr.bf16.mxu0 0
  %513 = vmatpush1.bf16.msra.mxu0 0
  %514 = vmatprep.subr.bf16.mxu0 0
  %515 = vmatpush1.bf16.msra.mxu0 0
  %516 = vmatprep.subr.bf16.mxu0 0
  %517 = vmatpush1.bf16.msra.mxu0 0
  %518 = vmatprep.subr.bf16.mxu0 0
  %519 = vmatpush1.bf16.msra.mxu0 0
  %520 = vmatprep.subr.bf16.mxu0 0
  %521 = vmatpush1.bf16.msra.mxu0 0
  %522 = vmatprep.subr.bf16.mxu0 0
  %523 = vmatpush1.bf16.msra.mxu0 0
  %524 = vmatprep.mubr.bf16.mxu0 0
  %525 = vmatmul.mubr.bf16.gmra.mrb[0].mxu0 %v488
  %v526 = vpop.f32.mrb[0].mxu0
  %v527 = vadd.f32 0.0, %v526
  %v528 = vpop.f32.mrb[0].mxu0
  %v529 = vpop.f32.mrb[0].mxu0
  %v530 = vpop.f32.mrb[0].mxu0
  %531 = vdwg.mxu0
  %v534 = vunpack.c.l.b16 %v111
  %v535 = vunpack.c.l.b16 %v112
  %v536 = vpack.c.b16 %v535, %v534
  %vm538 = vcmask 130048
  %v540 = vsel %vm538, %v485, 0
  %542 = vmatprep.subr.bf16.mxu0 0
  %543 = vmatpush1.bf16.msra.mxu0 %v536
  %544 = vmatprep.subr.bf16.mxu0 0
  %545 = vmatpush1.bf16.msra.mxu0 0
  %546 = vmatprep.subr.bf16.mxu0 0
  %547 = vmatpush1.bf16.msra.mxu0 0
  %548 = vmatprep.subr.bf16.mxu0 0
  %549 = vmatpush1.bf16.msra.mxu0 0
  %550 = vmatprep.subr.bf16.mxu0 0
  %551 = vmatpush1.bf16.msra.mxu0 0
  %552 = vmatprep.subr.bf16.mxu0 0
  %553 = vmatpush1.bf16.msra.mxu0 0
  %554 = vmatprep.subr.bf16.mxu0 0
  %555 = vmatpush1.bf16.msra.mxu0 0
  %556 = vmatprep.subr.bf16.mxu0 0
  %557 = vmatpush1.bf16.msra.mxu0 0
  %558 = vmatprep.subr.bf16.mxu0 0
  %559 = vmatpush1.bf16.msra.mxu0 0
  %560 = vmatprep.subr.bf16.mxu0 0
  %561 = vmatpush1.bf16.msra.mxu0 0
  %562 = vmatprep.subr.bf16.mxu0 0
  %563 = vmatpush1.bf16.msra.mxu0 0
  %564 = vmatprep.subr.bf16.mxu0 0
  %565 = vmatpush1.bf16.msra.mxu0 0
  %566 = vmatprep.subr.bf16.mxu0 0
  %567 = vmatpush1.bf16.msra.mxu0 0
  %568 = vmatprep.subr.bf16.mxu0 0
  %569 = vmatpush1.bf16.msra.mxu0 0
  %570 = vmatprep.subr.bf16.mxu0 0
  %571 = vmatpush1.bf16.msra.mxu0 0
  %572 = vmatprep.subr.bf16.mxu0 0
  %573 = vmatpush1.bf16.msra.mxu0 0
  %574 = vmatprep.mubr.bf16.mxu0 0
  %575 = vmatmul.mubr.bf16.gmra.mrb[0].mxu0 %v540
  %v576 = vpop.f32.mrb[0].mxu0
  %v577 = vadd.f32 %v527, %v576
  %v578 = vpop.f32.mrb[0].mxu0
  %v579 = vpop.f32.mrb[0].mxu0
  %v580 = vpop.f32.mrb[0].mxu0
  %581 = vdwg.mxu0
  %v582 = vld [vmem:[%s7] sm:$0xff]
  %584 = vset.pattern.permute.xlu0 0
  %585 = vperm.xlu0 %584, %v582
  %v586 = vpop.permute.xlu0 %585
  %v588 = vadd.f32 %v577, %v586
  %v589 = vmul.f32 %v588, 0.5
  %v590 = vmul.f32 %v588, 0.044715
  %v591 = vmul.f32 %v590, %v588
  %v592 = vmul.f32 %v591, %v588
  %v593 = vadd.f32 %v588, %v592
  %v594 = vmul.f32 %v593, 0.7978846
  %v595 = vtanh.pop %v594
  %v596 = vadd.f32 %v595, 1.0
  %v597 = vmul.f32 %v589, %v596
  %598 = vst.msk [vmem:[#allocation2 + $0x8] sm:$0xff] %vm104, %v597
  %v599 = vld [vmem:[#allocation2] sm:$0xff]
  %v600 = vld [vmem:[#allocation2 + $0x8] sm:$0xff]
  %v601 = vpack.c.bf16 %v600, %v599
  %v603 = vsel %vm104, %v601, 0
  %605 = vmatprep.subr.bf16.mxu0 0
  %606 = vmatpush1.bf16.msra.mxu0 %v125
  %607 = vmatprep.subr.bf16.mxu0 0
  %608 = vmatpush1.bf16.msra.mxu0 %v126
  %609 = vmatprep.subr.bf16.mxu0 0
  %610 = vmatpush1.bf16.msra.mxu0 %v135
  %611 = vmatprep.subr.bf16.mxu0 0
  %612 = vmatpush1.bf16.msra.mxu0 0
  %613 = vmatprep.subr.bf16.mxu0 0
  %614 = vmatpush1.bf16.msra.mxu0 0
  %615 = vmatprep.subr.bf16.mxu0 0
  %616 = vmatpush1.bf16.msra.mxu0 0
  %617 = vmatprep.subr.bf16.mxu0 0
  %618 = vmatpush1.bf16.msra.mxu0 0
  %619 = vmatprep.subr.bf16.mxu0 0
  %620 = vmatpush1.bf16.msra.mxu0 0
  %621 = vmatprep.subr.bf16.mxu0 0
  %622 = vmatpush1.bf16.msra.mxu0 0
  %623 = vmatprep.subr.bf16.mxu0 0
  %624 = vmatpush1.bf16.msra.mxu0 0
  %625 = vmatprep.subr.bf16.mxu0 0
  %626 = vmatpush1.bf16.msra.mxu0 0
  %627 = vmatprep.subr.bf16.mxu0 0
  %628 = vmatpush1.bf16.msra.mxu0 0
  %629 = vmatprep.subr.bf16.mxu0 0
  %630 = vmatpush1.bf16.msra.mxu0 0
  %631 = vmatprep.subr.bf16.mxu0 0
  %632 = vmatpush1.bf16.msra.mxu0 0
  %633 = vmatprep.subr.bf16.mxu0 0
  %634 = vmatpush1.bf16.msra.mxu0 0
  %635 = vmatprep.subr.bf16.mxu0 0
  %636 = vmatpush1.bf16.msra.mxu0 0
  %637 = vmatprep.mubr.bf16.mxu0 0
  %638 = vmatmul.mubr.bf16.gmra.mrb[0].mxu0 %v603
  %v639 = vpop.f32.mrb[0].mxu0
  %v640 = vadd.f32 0.0, %v639
  %v641 = vpop.f32.mrb[0].mxu0
  %v642 = vpop.f32.mrb[0].mxu0
  %v643 = vadd.f32 0.0, %v642
  %v644 = vpop.f32.mrb[0].mxu0
  %645 = vdwg.mxu0
  %v646 = vpack.c.bf16 %v643, %v640
  %v647 = vld [vmem:[%s8] sm:$0xf]
  %v648 = vld [vmem:[%s8 + $0x4] sm:$0xf]
  %v649 = vld [vmem:[%s8 + $0x8] sm:$0xf]
  %v650 = vld [vmem:[%s8 + $0xc] sm:$0xf]
  %v655 = vunpack.c.l.b16 %v647
  %v656 = vunpack.c.l.b16 %v648
  %v657 = vunpack.c.l.b16 %v649
  %v658 = vunpack.c.l.b16 %v650
  %v659 = vpack.c.b16 %v656, %v655
  %v660 = vpack.c.b16 %v658, %v657
  %v662 = vsel %vm538, %v659, 0
  %v665 = vsel %vm538, %v660, 0
  %667 = vmatprep.subr.bf16.mxu0 0
  %668 = vmatpush1.bf16.msra.mxu0 %v646
  %669 = vmatprep.subr.bf16.mxu0 0
  %670 = vmatpush1.bf16.msra.mxu0 0
  %671 = vmatprep.subr.bf16.mxu0 0
  %672 = vmatpush1.bf16.msra.mxu0 0
  %673 = vmatprep.subr.bf16.mxu0 0
  %674 = vmatpush1.bf16.msra.mxu0 0
  %675 = vmatprep.subr.bf16.mxu0 0
  %676 = vmatpush1.bf16.msra.mxu0 0
  %677 = vmatprep.subr.bf16.mxu0 0
  %678 = vmatpush1.bf16.msra.mxu0 0
  %679 = vmatprep.subr.bf16.mxu0 0
  %680 = vmatpush1.bf16.msra.mxu0 0
  %681 = vmatprep.subr.bf16.mxu0 0
  %682 = vmatpush1.bf16.msra.mxu0 0
  %683 = vmatprep.subr.bf16.mxu0 0
  %684 = vmatpush1.bf16.msra.mxu0 0
  %685 = vmatprep.subr.bf16.mxu0 0
  %686 = vmatpush1.bf16.msra.mxu0 0
  %687 = vmatprep.subr.bf16.mxu0 0
  %688 = vmatpush1.bf16.msra.mxu0 0
  %689 = vmatprep.subr.bf16.mxu0 0
  %690 = vmatpush1.bf16.msra.mxu0 0
  %691 = vmatprep.subr.bf16.mxu0 0
  %692 = vmatpush1.bf16.msra.mxu0 0
  %693 = vmatprep.subr.bf16.mxu0 0
  %694 = vmatpush1.bf16.msra.mxu0 0
  %695 = vmatprep.subr.bf16.mxu0 0
  %696 = vmatpush1.bf16.msra.mxu0 0
  %697 = vmatprep.subr.bf16.mxu0 0
  %698 = vmatpush1.bf16.msra.mxu0 0
  %699 = vmatprep.mubr.bf16.mxu0 0
  %700 = vmatmul.mubr.bf16.gmra.mrb[0].mxu0 %v662
  %v701 = vpop.f32.mrb[0].mxu0
  %v702 = vadd.f32 0.0, %v701
  %v703 = vpop.f32.mrb[0].mxu0
  %v704 = vpop.f32.mrb[0].mxu0
  %v705 = vadd.f32 0.0, %v704
  %v706 = vpop.f32.mrb[0].mxu0
  %707 = vmatprep.mubr.bf16.mxu0 0
  %708 = vmatmul.mubr.bf16.gmra.mrb[0].mxu0 %v665
  %v709 = vpop.f32.mrb[0].mxu0
  %v710 = vadd.f32 0.0, %v709
  %v711 = vpop.f32.mrb[0].mxu0
  %v712 = vpop.f32.mrb[0].mxu0
  %v713 = vadd.f32 0.0, %v712
  %v714 = vpop.f32.mrb[0].mxu0
  %715 = vdwg.mxu0
  %718 = vrot.lane.b32.xlu0 %v710, 126
  %v719 = vpop.permute.xlu0 %718
  %720 = vrot.lane.b32.xlu0 %v713, 126
  %v721 = vpop.permute.xlu0 %720
  %v724 = vsub.f32 %v702, %v719
  %v725 = vsub.f32 %v705, %v721
  %728 = vrot.lane.b32.xlu0 %v702, 126
  %v729 = vpop.permute.xlu0 %728
  %730 = vrot.lane.b32.xlu0 %v705, 126
  %v731 = vpop.permute.xlu0 %730
  %v734 = vadd.f32 %v710, %v729
  %v735 = vadd.f32 %v713, %v731
  %s736 = scalar_lea.vmem %s8, 16
  %v737 = vld [vmem:[%s736] sm:$0xf]
  %v738 = vld [vmem:[%s736 + $0x4] sm:$0xf]
  %v739 = vld [vmem:[%s736 + $0x8] sm:$0xf]
  %v740 = vld [vmem:[%s736 + $0xc] sm:$0xf]
  %v745 = vunpack.c.l.b16 %v737
  %v746 = vunpack.c.l.b16 %v738
  %v747 = vunpack.c.l.b16 %v739
  %v748 = vunpack.c.l.b16 %v740
  %v749 = vpack.c.b16 %v746, %v745
  %v750 = vpack.c.b16 %v748, %v747
  %752 = vrot.lane.b32.xlu0 %v646, 124
  %v753 = vpop.permute.xlu0 %752
  %v756 = vsel %vm538, %v749, 0
  %v759 = vsel %vm538, %v750, 0
  %761 = vmatprep.subr.bf16.mxu0 0
  %762 = vmatpush1.bf16.msra.mxu0 %v753
  %763 = vmatprep.subr.bf16.mxu0 0
  %764 = vmatpush1.bf16.msra.mxu0 0
  %765 = vmatprep.subr.bf16.mxu0 0
  %766 = vmatpush1.bf16.msra.mxu0 0
  %767 = vmatprep.subr.bf16.mxu0 0
  %768 = vmatpush1.bf16.msra.mxu0 0
  %769 = vmatprep.subr.bf16.mxu0 0
  %770 = vmatpush1.bf16.msra.mxu0 0
  %771 = vmatprep.subr.bf16.mxu0 0
  %772 = vmatpush1.bf16.msra.mxu0 0
  %773 = vmatprep.subr.bf16.mxu0 0
  %774 = vmatpush1.bf16.msra.mxu0 0
  %775 = vmatprep.subr.bf16.mxu0 0
  %776 = vmatpush1.bf16.msra.mxu0 0
  %777 = vmatprep.subr.bf16.mxu0 0
  %778 = vmatpush1.bf16.msra.mxu0 0
  %779 = vmatprep.subr.bf16.mxu0 0
  %780 = vmatpush1.bf16.msra.mxu0 0
  %781 = vmatprep.subr.bf16.mxu0 0
  %782 = vmatpush1.bf16.msra.mxu0 0
  %783 = vmatprep.subr.bf16.mxu0 0
  %784 = vmatpush1.bf16.msra.mxu0 0
  %785 = vmatprep.subr.bf16.mxu0 0
  %786 = vmatpush1.bf16.msra.mxu0 0
  %787 = vmatprep.subr.bf16.mxu0 0
  %788 = vmatpush1.bf16.msra.mxu0 0
  %789 = vmatprep.subr.bf16.mxu0 0
  %790 = vmatpush1.bf16.msra.mxu0 0
  %791 = vmatprep.subr.bf16.mxu0 0
  %792 = vmatpush1.bf16.msra.mxu0 0
  %793 = vmatprep.mubr.bf16.mxu0 0
  %794 = vmatmul.mubr.bf16.gmra.mrb[0].mxu0 %v756
  %v795 = vpop.f32.mrb[0].mxu0
  %v796 = vadd.f32 0.0, %v795
  %v797 = vpop.f32.mrb[0].mxu0
  %v798 = vpop.f32.mrb[0].mxu0
  %v799 = vadd.f32 0.0, %v798
  %v800 = vpop.f32.mrb[0].mxu0
  %801 = vmatprep.mubr.bf16.mxu0 0
  %802 = vmatmul.mubr.bf16.gmra.mrb[0].mxu0 %v759
  %v803 = vpop.f32.mrb[0].mxu0
  %v804 = vadd.f32 0.0, %v803
  %v805 = vpop.f32.mrb[0].mxu0
  %v806 = vpop.f32.mrb[0].mxu0
  %v807 = vadd.f32 0.0, %v806
  %v808 = vpop.f32.mrb[0].mxu0
  %809 = vdwg.mxu0
  %812 = vrot.lane.b32.xlu0 %v804, 126
  %v813 = vpop.permute.xlu0 %812
  %814 = vrot.lane.b32.xlu0 %v807, 126
  %v815 = vpop.permute.xlu0 %814
  %v818 = vsub.f32 %v796, %v813
  %v819 = vsub.f32 %v799, %v815
  %822 = vrot.lane.b32.xlu0 %v796, 126
  %v823 = vpop.permute.xlu0 %822
  %824 = vrot.lane.b32.xlu0 %v799, 126
  %v825 = vpop.permute.xlu0 %824
  %v828 = vadd.f32 %v804, %v823
  %v829 = vadd.f32 %v807, %v825
  %s830 = scalar_lea.vmem %s8, 32
  %v831 = vld [vmem:[%s830] sm:$0xf]
  %v832 = vld [vmem:[%s830 + $0x4] sm:$0xf]
  %v833 = vld [vmem:[%s830 + $0x8] sm:$0xf]
  %v834 = vld [vmem:[%s830 + $0xc] sm:$0xf]
  %v839 = vunpack.c.l.b16 %v831
  %v840 = vunpack.c.l.b16 %v832
  %v841 = vunpack.c.l.b16 %v833
  %v842 = vunpack.c.l.b16 %v834
  %v843 = vpack.c.b16 %v840, %v839
  %v844 = vpack.c.b16 %v842, %v841
  %845 = vrot.lane.b32.xlu0 %v646, 120
  %v846 = vpop.permute.xlu0 %845
  %v849 = vsel %vm538, %v843, 0
  %v852 = vsel %vm538, %v844, 0
  %854 = vmatprep.subr.bf16.mxu0 0
  %855 = vmatpush1.bf16.msra.mxu0 %v846
  %856 = vmatprep.subr.bf16.mxu0 0
  %857 = vmatpush1.bf16.msra.mxu0 0
  %858 = vmatprep.subr.bf16.mxu0 0
  %859 = vmatpush1.bf16.msra.mxu0 0
  %860 = vmatprep.subr.bf16.mxu0 0
  %861 = vmatpush1.bf16.msra.mxu0 0
  %862 = vmatprep.subr.bf16.mxu0 0
  %863 = vmatpush1.bf16.msra.mxu0 0
  %864 = vmatprep.subr.bf16.mxu0 0
  %865 = vmatpush1.bf16.msra.mxu0 0
  %866 = vmatprep.subr.bf16.mxu0 0
  %867 = vmatpush1.bf16.msra.mxu0 0
  %868 = vmatprep.subr.bf16.mxu0 0
  %869 = vmatpush1.bf16.msra.mxu0 0
  %870 = vmatprep.subr.bf16.mxu0 0
  %871 = vmatpush1.bf16.msra.mxu0 0
  %872 = vmatprep.subr.bf16.mxu0 0
  %873 = vmatpush1.bf16.msra.mxu0 0
  %874 = vmatprep.subr.bf16.mxu0 0
  %875 = vmatpush1.bf16.msra.mxu0 0
  %876 = vmatprep.subr.bf16.mxu0 0
  %877 = vmatpush1.bf16.msra.mxu0 0
  %878 = vmatprep.subr.bf16.mxu0 0
  %879 = vmatpush1.bf16.msra.mxu0 0
  %880 = vmatprep.subr.bf16.mxu0 0
  %881 = vmatpush1.bf16.msra.mxu0 0
  %882 = vmatprep.subr.bf16.mxu0 0
  %883 = vmatpush1.bf16.msra.mxu0 0
  %884 = vmatprep.subr.bf16.mxu0 0
  %885 = vmatpush1.bf16.msra.mxu0 0
  %886 = vmatprep.mubr.bf16.mxu0 0
  %887 = vmatmul.mubr.bf16.gmra.mrb[0].mxu0 %v849
  %v888 = vpop.f32.mrb[0].mxu0
  %v889 = vadd.f32 0.0, %v888
  %v890 = vpop.f32.mrb[0].mxu0
  %v891 = vpop.f32.mrb[0].mxu0
  %v892 = vadd.f32 0.0, %v891
  %v893 = vpop.f32.mrb[0].mxu0
  %894 = vmatprep.mubr.bf16.mxu0 0
  %895 = vmatmul.mubr.bf16.gmra.mrb[0].mxu0 %v852
  %v896 = vpop.f32.mrb[0].mxu0
  %v897 = vadd.f32 0.0, %v896
  %v898 = vpop.f32.mrb[0].mxu0
  %v899 = vpop.f32.mrb[0].mxu0
  %v900 = vadd.f32 0.0, %v899
  %v901 = vpop.f32.mrb[0].mxu0
  %902 = vdwg.mxu0
  %905 = vrot.lane.b32.xlu0 %v897, 126
  %v906 = vpop.permute.xlu0 %905
  %907 = vrot.lane.b32.xlu0 %v900, 126
  %v908 = vpop.permute.xlu0 %907
  %v911 = vsub.f32 %v889, %v906
  %v912 = vsub.f32 %v892, %v908
  %915 = vrot.lane.b32.xlu0 %v889, 126
  %v916 = vpop.permute.xlu0 %915
  %917 = vrot.lane.b32.xlu0 %v892, 126
  %v918 = vpop.permute.xlu0 %917
  %v921 = vadd.f32 %v897, %v916
  %v922 = vadd.f32 %v900, %v918
  %s923 = scalar_lea.vmem %s8, 48
  %v924 = vld [vmem:[%s923] sm:$0xf]
  %v925 = vld [vmem:[%s923 + $0x4] sm:$0xf]
  %v926 = vld [vmem:[%s923 + $0x8] sm:$0xf]
  %v927 = vld [vmem:[%s923 + $0xc] sm:$0xf]
  %v932 = vunpack.c.l.b16 %v924
  %v933 = vunpack.c.l.b16 %v925
  %v934 = vunpack.c.l.b16 %v926
  %v935 = vunpack.c.l.b16 %v927
  %v936 = vpack.c.b16 %v933, %v932
  %v937 = vpack.c.b16 %v935, %v934
  %938 = vrot.lane.b32.xlu0 %v646, 116
  %v939 = vpop.permute.xlu0 %938
  %v942 = vsel %vm538, %v936, 0
  %v945 = vsel %vm538, %v937, 0
  %947 = vmatprep.subr.bf16.mxu0 0
  %948 = vmatpush1.bf16.msra.mxu0 %v939
  %949 = vmatprep.subr.bf16.mxu0 0
  %950 = vmatpush1.bf16.msra.mxu0 0
  %951 = vmatprep.subr.bf16.mxu0 0
  %952 = vmatpush1.bf16.msra.mxu0 0
  %953 = vmatprep.subr.bf16.mxu0 0
  %954 = vmatpush1.bf16.msra.mxu0 0
  %955 = vmatprep.subr.bf16.mxu0 0
  %956 = vmatpush1.bf16.msra.mxu0 0
  %957 = vmatprep.subr.bf16.mxu0 0
  %958 = vmatpush1.bf16.msra.mxu0 0
  %959 = vmatprep.subr.bf16.mxu0 0
  %960 = vmatpush1.bf16.msra.mxu0 0
  %961 = vmatprep.subr.bf16.mxu0 0
  %962 = vmatpush1.bf16.msra.mxu0 0
  %963 = vmatprep.subr.bf16.mxu0 0
  %964 = vmatpush1.bf16.msra.mxu0 0
  %965 = vmatprep.subr.bf16.mxu0 0
  %966 = vmatpush1.bf16.msra.mxu0 0
  %967 = vmatprep.subr.bf16.mxu0 0
  %968 = vmatpush1.bf16.msra.mxu0 0
  %969 = vmatprep.subr.bf16.mxu0 0
  %970 = vmatpush1.bf16.msra.mxu0 0
  %971 = vmatprep.subr.bf16.mxu0 0
  %972 = vmatpush1.bf16.msra.mxu0 0
  %973 = vmatprep.subr.bf16.mxu0 0
  %974 = vmatpush1.bf16.msra.mxu0 0
  %975 = vmatprep.subr.bf16.mxu0 0
  %976 = vmatpush1.bf16.msra.mxu0 0
  %977 = vmatprep.subr.bf16.mxu0 0
  %978 = vmatpush1.bf16.msra.mxu0 0
  %979 = vmatprep.mubr.bf16.mxu0 0
  %980 = vmatmul.mubr.bf16.gmra.mrb[0].mxu0 %v942
  %v981 = vpop.f32.mrb[0].mxu0
  %v982 = vadd.f32 0.0, %v981
  %v983 = vpop.f32.mrb[0].mxu0
  %v984 = vpop.f32.mrb[0].mxu0
  %v985 = vadd.f32 0.0, %v984
  %v986 = vpop.f32.mrb[0].mxu0
  %987 = vmatprep.mubr.bf16.mxu0 0
  %988 = vmatmul.mubr.bf16.gmra.mrb[0].mxu0 %v945
  %v989 = vpop.f32.mrb[0].mxu0
  %v990 = vadd.f32 0.0, %v989
  %v991 = vpop.f32.mrb[0].mxu0
  %v992 = vpop.f32.mrb[0].mxu0
  %v993 = vadd.f32 0.0, %v992
  %v994 = vpop.f32.mrb[0].mxu0
  %995 = vdwg.mxu0
  %998 = vrot.lane.b32.xlu0 %v990, 126
  %v999 = vpop.permute.xlu0 %998
  %1000 = vrot.lane.b32.xlu0 %v993, 126
  %v1001 = vpop.permute.xlu0 %1000
  %v1004 = vsub.f32 %v982, %v999
  %v1005 = vsub.f32 %v985, %v1001
  %1008 = vrot.lane.b32.xlu0 %v982, 126
  %v1009 = vpop.permute.xlu0 %1008
  %1010 = vrot.lane.b32.xlu0 %v985, 126
  %v1011 = vpop.permute.xlu0 %1010
  %v1014 = vadd.f32 %v990, %v1009
  %v1015 = vadd.f32 %v993, %v1011
  %1018 = vrot.lane.b32.xlu0 %v734, 2
  %v1019 = vpop.permute.xlu0 %1018
  %1020 = vrot.lane.b32.xlu0 %v735, 2
  %v1021 = vpop.permute.xlu0 %1020
  %1026 = vrot.lane.b32.xlu0 %v818, 4
  %v1027 = vpop.permute.xlu0 %1026
  %1028 = vrot.lane.b32.xlu0 %v819, 4
  %v1029 = vpop.permute.xlu0 %1028
  %1034 = vrot.lane.b32.xlu0 %v828, 6
  %v1035 = vpop.permute.xlu0 %1034
  %1036 = vrot.lane.b32.xlu0 %v829, 6
  %v1037 = vpop.permute.xlu0 %1036
  %1042 = vrot.lane.b32.xlu0 %v911, 8
  %v1043 = vpop.permute.xlu0 %1042
  %1044 = vrot.lane.b32.xlu0 %v912, 8
  %v1045 = vpop.permute.xlu0 %1044
  %1050 = vrot.lane.b32.xlu0 %v921, 10
  %v1051 = vpop.permute.xlu0 %1050
  %1052 = vrot.lane.b32.xlu0 %v922, 10
  %v1053 = vpop.permute.xlu0 %1052
  %1058 = vrot.lane.b32.xlu0 %v1004, 12
  %v1059 = vpop.permute.xlu0 %1058
  %1060 = vrot.lane.b32.xlu0 %v1005, 12
  %v1061 = vpop.permute.xlu0 %1060
  %1066 = vrot.lane.b32.xlu0 %v1014, 14
  %v1067 = vpop.permute.xlu0 %1066
  %1068 = vrot.lane.b32.xlu0 %v1015, 14
  %v1069 = vpop.permute.xlu0 %1068
  %v1072 = vsel %vm472, %v724, %v1019
  %v1073 = vsel %vm472, %v725, %v1021
  %v1074 = vsel %vm474, %v1072, %v1027
  %v1075 = vsel %vm474, %v1073, %v1029
  %v1076 = vsel %vm476, %v1074, %v1035
  %v1077 = vsel %vm476, %v1075, %v1037
  %v1078 = vsel %vm56, %v1076, %v1043
  %v1079 = vsel %vm56, %v1077, %v1045
  %v1080 = vsel %vm479, %v1078, %v1051
  %v1081 = vsel %vm479, %v1079, %v1053
  %v1082 = vsel %vm481, %v1080, %v1059
  %v1083 = vsel %vm481, %v1081, %v1061
  %v1084 = vsel %vm483, %v1082, %v1067
  %v1085 = vsel %vm483, %v1083, %v1069
  %v1086 = vpack.c.bf16 %v1085, %v1084
  %v1087 = vld [vmem:[%s9] sm:$0xf]
  %v1088 = vld [vmem:[%s9 + $0x4] sm:$0xf]
  %v1091 = vunpack.c.l.b16 %v1087
  %v1092 = vunpack.c.l.b16 %v1088
  %v1093 = vpack.c.b16 %v1092, %v1091
  %v1095 = vsel %vm538, %v1093, 0
  %1097 = vmatprep.subr.bf16.mxu0 0
  %1098 = vmatpush1.bf16.msra.mxu0 %v601
  %1099 = vmatprep.subr.bf16.mxu0 0
  %1100 = vmatpush1.bf16.msra.mxu0 0
  %1101 = vmatprep.subr.bf16.mxu0 0
  %1102 = vmatpush1.bf16.msra.mxu0 0
  %1103 = vmatprep.subr.bf16.mxu0 0
  %1104 = vmatpush1.bf16.msra.mxu0 0
  %1105 = vmatprep.subr.bf16.mxu0 0
  %1106 = vmatpush1.bf16.msra.mxu0 0
  %1107 = vmatprep.subr.bf16.mxu0 0
  %1108 = vmatpush1.bf16.msra.mxu0 0
  %1109 = vmatprep.subr.bf16.mxu0 0
  %1110 = vmatpush1.bf16.msra.mxu0 0
  %1111 = vmatprep.subr.bf16.mxu0 0
  %1112 = vmatpush1.bf16.msra.mxu0 0
  %1113 = vmatprep.subr.bf16.mxu0 0
  %1114 = vmatpush1.bf16.msra.mxu0 0
  %1115 = vmatprep.subr.bf16.mxu0 0
  %1116 = vmatpush1.bf16.msra.mxu0 0
  %1117 = vmatprep.subr.bf16.mxu0 0
  %1118 = vmatpush1.bf16.msra.mxu0 0
  %1119 = vmatprep.subr.bf16.mxu0 0
  %1120 = vmatpush1.bf16.msra.mxu0 0
  %1121 = vmatprep.subr.bf16.mxu0 0
  %1122 = vmatpush1.bf16.msra.mxu0 0
  %1123 = vmatprep.subr.bf16.mxu0 0
  %1124 = vmatpush1.bf16.msra.mxu0 0
  %1125 = vmatprep.subr.bf16.mxu0 0
  %1126 = vmatpush1.bf16.msra.mxu0 0
  %1127 = vmatprep.subr.bf16.mxu0 0
  %1128 = vmatpush1.bf16.msra.mxu0 0
  %1129 = vmatprep.mubr.bf16.mxu0 0
  %1130 = vmatmul.mubr.bf16.gmra.mrb[0].mxu0 %v1095
  %v1131 = vpop.f32.mrb[0].mxu0
  %v1132 = vadd.f32 0.0, %v1131
  %v1133 = vpop.f32.mrb[0].mxu0
  %v1134 = vpop.f32.mrb[0].mxu0
  %v1135 = vadd.f32 0.0, %v1134
  %v1136 = vpop.f32.mrb[0].mxu0
  %1137 = vdwg.mxu0
  %v1139 = vsel %vm538, %v1086, 0
  %1141 = vmatprep.subr.bf16.mxu0 0
  %1142 = vmatpush1.bf16.msra.mxu0 %v536
  %1143 = vmatprep.subr.bf16.mxu0 0
  %1144 = vmatpush1.bf16.msra.mxu0 0
  %1145 = vmatprep.subr.bf16.mxu0 0
  %1146 = vmatpush1.bf16.msra.mxu0 0
  %1147 = vmatprep.subr.bf16.mxu0 0
  %1148 = vmatpush1.bf16.msra.mxu0 0
  %1149 = vmatprep.subr.bf16.mxu0 0
  %1150 = vmatpush1.bf16.msra.mxu0 0
  %1151 = vmatprep.subr.bf16.mxu0 0
  %1152 = vmatpush1.bf16.msra.mxu0 0
  %1153 = vmatprep.subr.bf16.mxu0 0
  %1154 = vmatpush1.bf16.msra.mxu0 0
  %1155 = vmatprep.subr.bf16.mxu0 0
  %1156 = vmatpush1.bf16.msra.mxu0 0
  %1157 = vmatprep.subr.bf16.mxu0 0
  %1158 = vmatpush1.bf16.msra.mxu0 0
  %1159 = vmatprep.subr.bf16.mxu0 0
  %1160 = vmatpush1.bf16.msra.mxu0 0
  %1161 = vmatprep.subr.bf16.mxu0 0
  %1162 = vmatpush1.bf16.msra.mxu0 0
  %1163 = vmatprep.subr.bf16.mxu0 0
  %1164 = vmatpush1.bf16.msra.mxu0 0
  %1165 = vmatprep.subr.bf16.mxu0 0
  %1166 = vmatpush1.bf16.msra.mxu0 0
  %1167 = vmatprep.subr.bf16.mxu0 0
  %1168 = vmatpush1.bf16.msra.mxu0 0
  %1169 = vmatprep.subr.bf16.mxu0 0
  %1170 = vmatpush1.bf16.msra.mxu0 0
  %1171 = vmatprep.subr.bf16.mxu0 0
  %1172 = vmatpush1.bf16.msra.mxu0 0
  %1173 = vmatprep.mubr.bf16.mxu0 0
  %1174 = vmatmul.mubr.bf16.gmra.mrb[0].mxu0 %v1139
  %v1175 = vpop.f32.mrb[0].mxu0
  %v1176 = vadd.f32 %v1132, %v1175
  %v1177 = vpop.f32.mrb[0].mxu0
  %v1178 = vpop.f32.mrb[0].mxu0
  %v1179 = vadd.f32 %v1135, %v1178
  %v1180 = vpop.f32.mrb[0].mxu0
  %1181 = vdwg.mxu0
  %v1182 = vld [vmem:[%s10] sm:$0xff]
  %v1183 = vld [vmem:[%s10 + $0x8] sm:$0xff]
  %1185 = vset.pattern.permute.xlu0 0
  %1186 = vperm.xlu0 %1185, %v1182
  %v1187 = vpop.permute.xlu0 %1186
  %1190 = vset.pattern.permute.xlu0 0
  %1191 = vperm.xlu0 %1190, %v1183
  %v1192 = vpop.permute.xlu0 %1191
  %v1194 = vadd.f32 %v1176, %v1187
  %v1195 = vadd.f32 %v1179, %v1192
  %v1196 = vmul.f32 %v1194, 0.5
  %v1197 = vmul.f32 %v1195, 0.5
  %v1198 = vmul.f32 %v1194, 0.044715
  %v1199 = vmul.f32 %v1195, 0.044715
  %v1200 = vmul.f32 %v1198, %v1194
  %v1201 = vmul.f32 %v1199, %v1195
  %v1202 = vmul.f32 %v1200, %v1194
  %v1203 = vmul.f32 %v1201, %v1195
  %v1204 = vadd.f32 %v1194, %v1202
  %v1205 = vadd.f32 %v1195, %v1203
  %v1206 = vmul.f32 %v1204, 0.7978846
  %v1207 = vmul.f32 %v1205, 0.7978846
  %v1208 = vtanh.pop %v1206
  %v1209 = vtanh.pop %v1207
  %v1210 = vadd.f32 %v1208, 1.0
  %v1211 = vadd.f32 %v1209, 1.0
  %v1212 = vmul.f32 %v1196, %v1210
  %v1213 = vmul.f32 %v1197, %v1211
  %1214 = vst.msk [vmem:[#allocation2 + $0x10] sm:$0xff] %vm104, %v1212
  %1215 = vst.msk [vmem:[#allocation2 + $0x18] sm:$0xff] %vm104, %v1213
  %v1216 = vld [vmem:[#allocation2] sm:$0xff]
  %v1217 = vld [vmem:[#allocation2 + $0x8] sm:$0xff]
  %v1218 = vld [vmem:[#allocation2 + $0x10] sm:$0xff]
  %v1219 = vld [vmem:[#allocation2 + $0x18] sm:$0xff]
  %v1220 = vpack.c.bf16 %v1217, %v1216
  %v1221 = vpack.c.bf16 %v1219, %v1218
  %v1222 = vld [vmem:[%s11] sm:$0xf]
  %v1223 = vld [vmem:[%s11 + $0x4] sm:$0xf]
  %v1224 = vld [vmem:[%s11 + $0x8] sm:$0xf]
  %v1225 = vld [vmem:[%s11 + $0xc] sm:$0xf]
  %v1226 = vld [vmem:[%s11 + $0x10] sm:$0xf]
  %v1227 = vld [vmem:[%s11 + $0x14] sm:$0xf]
  %v1228 = vld [vmem:[%s11 + $0x18] sm:$0xf]
  %v1229 = vld [vmem:[%s11 + $0x1c] sm:$0xf]
  %v1230 = vld [vmem:[%s11 + $0x20] sm:$0xf]
  %v1231 = vld [vmem:[%s11 + $0x24] sm:$0xf]
  %v1232 = vld [vmem:[%s11 + $0x28] sm:$0xf]
  %v1233 = vld [vmem:[%s11 + $0x2c] sm:$0xf]
  %v1234 = vld [vmem:[%s11 + $0x30] sm:$0xf]
  %v1235 = vld [vmem:[%s11 + $0x34] sm:$0xf]
  %v1236 = vld [vmem:[%s11 + $0x38] sm:$0xf]
  %v1237 = vld [vmem:[%s11 + $0x3c] sm:$0xf]
  %v1238 = vld [vmem:[%s12] sm:$0xff]
  %v1239 = vld [vmem:[%s12 + $0x8] sm:$0xff]
  %v1240 = vld [vmem:[%s12 + $0x10] sm:$0xff]
  %v1241 = vld [vmem:[%s12 + $0x18] sm:$0xff]
  %v1242 = vld [vmem:[%s12 + $0x20] sm:$0xff]
  %v1243 = vld [vmem:[%s12 + $0x28] sm:$0xff]
  %v1244 = vld [vmem:[%s12 + $0x30] sm:$0xff]
  %v1245 = vld [vmem:[%s12 + $0x38] sm:$0xff]
  %v1246 = vld [vmem:[%s12 + $0x40] sm:$0xff]
  %v1247 = vld [vmem:[%s12 + $0x48] sm:$0xff]
  %v1248 = vld [vmem:[%s12 + $0x50] sm:$0xff]
  %v1249 = vld [vmem:[%s12 + $0x58] sm:$0xff]
  %v1250 = vld [vmem:[%s12 + $0x60] sm:$0xff]
  %v1251 = vld [vmem:[%s12 + $0x68] sm:$0xff]
  %v1252 = vld [vmem:[%s12 + $0x70] sm:$0xff]
  %v1253 = vld [vmem:[%s12 + $0x78] sm:$0xff]
  %1255 = vset.pattern.permute.xlu0 0
  %1256 = vperm.xlu0 %1255, %v1238
  %v1257 = vpop.permute.xlu0 %1256
  %1260 = vset.pattern.permute.xlu0 0
  %1261 = vperm.xlu0 %1260, %v1239
  %v1262 = vpop.permute.xlu0 %1261
  %1265 = vset.pattern.permute.xlu0 0
  %1266 = vperm.xlu0 %1265, %v1240
  %v1267 = vpop.permute.xlu0 %1266
  %1270 = vset.pattern.permute.xlu0 0
  %1271 = vperm.xlu0 %1270, %v1241
  %v1272 = vpop.permute.xlu0 %1271
  %1275 = vset.pattern.permute.xlu0 0
  %1276 = vperm.xlu0 %1275, %v1242
  %v1277 = vpop.permute.xlu0 %1276
  %1280 = vset.pattern.permute.xlu0 0
  %1281 = vperm.xlu0 %1280, %v1243
  %v1282 = vpop.permute.xlu0 %1281
  %1285 = vset.pattern.permute.xlu0 0
  %1286 = vperm.xlu0 %1285, %v1244
  %v1287 = vpop.permute.xlu0 %1286
  %1290 = vset.pattern.permute.xlu0 0
  %1291 = vperm.xlu0 %1290, %v1245
  %v1292 = vpop.permute.xlu0 %1291
  %1295 = vset.pattern.permute.xlu0 0
  %1296 = vperm.xlu0 %1295, %v1246
  %v1297 = vpop.permute.xlu0 %1296
  %1300 = vset.pattern.permute.xlu0 0
  %1301 = vperm.xlu0 %1300, %v1247
  %v1302 = vpop.permute.xlu0 %1301
  %1305 = vset.pattern.permute.xlu0 0
  %1306 = vperm.xlu0 %1305, %v1248
  %v1307 = vpop.permute.xlu0 %1306
  %1310 = vset.pattern.permute.xlu0 0
  %1311 = vperm.xlu0 %1310, %v1249
  %v1312 = vpop.permute.xlu0 %1311
  %1315 = vset.pattern.permute.xlu0 0
  %1316 = vperm.xlu0 %1315, %v1250
  %v1317 = vpop.permute.xlu0 %1316
  %1320 = vset.pattern.permute.xlu0 0
  %1321 = vperm.xlu0 %1320, %v1251
  %v1322 = vpop.permute.xlu0 %1321
  %1325 = vset.pattern.permute.xlu0 0
  %1326 = vperm.xlu0 %1325, %v1252
  %v1327 = vpop.permute.xlu0 %1326
  %1330 = vset.pattern.permute.xlu0 0
  %1331 = vperm.xlu0 %1330, %v1253
  %v1332 = vpop.permute.xlu0 %1331
  %v1350 = vunpack.c.l.b16 %v1222
  %v1351 = vunpack.c.l.b16 %v1223
  %v1352 = vunpack.c.l.b16 %v1224
  %v1353 = vunpack.c.l.b16 %v1225
  %v1354 = vunpack.c.l.b16 %v1226
  %v1355 = vunpack.c.l.b16 %v1227
  %v1356 = vunpack.c.l.b16 %v1228
  %v1357 = vunpack.c.l.b16 %v1229
  %v1358 = vunpack.c.l.b16 %v1230
  %v1359 = vunpack.c.l.b16 %v1231
  %v1360 = vunpack.c.l.b16 %v1232
  %v1361 = vunpack.c.l.b16 %v1233
  %v1362 = vunpack.c.l.b16 %v1234
  %v1363 = vunpack.c.l.b16 %v1235
  %v1364 = vunpack.c.l.b16 %v1236
  %v1365 = vunpack.c.l.b16 %v1237
  %v1366 = vpack.c.b16 %v1351, %v1350
  %v1367 = vpack.c.b16 %v1353, %v1352
  %v1368 = vpack.c.b16 %v1355, %v1354
  %v1369 = vpack.c.b16 %v1357, %v1356
  %v1370 = vpack.c.b16 %v1359, %v1358
  %v1371 = vpack.c.b16 %v1361, %v1360
  %v1372 = vpack.c.b16 %v1363, %v1362
  %v1373 = vpack.c.b16 %v1365, %v1364
  %vm1374 = vcmask 261120
  %v1376 = vsel %vm1374, %v1366, 0
  %v1379 = vsel %vm1374, %v1367, 0
  %v1382 = vsel %vm1374, %v1368, 0
  %v1385 = vsel %vm1374, %v1369, 0
  %v1388 = vsel %vm1374, %v1370, 0
  %v1391 = vsel %vm1374, %v1371, 0
  %v1394 = vsel %vm1374, %v1372, 0
  %v1397 = vsel %vm1374, %v1373, 0
  %1399 = vmatprep.subr.bf16.mxu0 0
  %1400 = vmatpush1.bf16.msra.mxu0 %v1220
  %1401 = vmatprep.subr.bf16.mxu0 0
  %1402 = vmatpush1.bf16.msra.mxu0 %v1221
  %1403 = vmatprep.subr.bf16.mxu0 0
  %1404 = vmatpush1.bf16.msra.mxu0 0
  %1405 = vmatprep.subr.bf16.mxu0 0
  %1406 = vmatpush1.bf16.msra.mxu0 0
  %1407 = vmatprep.subr.bf16.mxu0 0
  %1408 = vmatpush1.bf16.msra.mxu0 0
  %1409 = vmatprep.subr.bf16.mxu0 0
  %1410 = vmatpush1.bf16.msra.mxu0 0
  %1411 = vmatprep.subr.bf16.mxu0 0
  %1412 = vmatpush1.bf16.msra.mxu0 0
  %1413 = vmatprep.subr.bf16.mxu0 0
  %1414 = vmatpush1.bf16.msra.mxu0 0
  %1415 = vmatprep.subr.bf16.mxu0 0
  %1416 = vmatpush1.bf16.msra.mxu0 0
  %1417 = vmatprep.subr.bf16.mxu0 0
  %1418 = vmatpush1.bf16.msra.mxu0 0
  %1419 = vmatprep.subr.bf16.mxu0 0
  %1420 = vmatpush1.bf16.msra.mxu0 0
  %1421 = vmatprep.subr.bf16.mxu0 0
  %1422 = vmatpush1.bf16.msra.mxu0 0
  %1423 = vmatprep.subr.bf16.mxu0 0
  %1424 = vmatpush1.bf16.msra.mxu0 0
  %1425 = vmatprep.subr.bf16.mxu0 0
  %1426 = vmatpush1.bf16.msra.mxu0 0
  %1427 = vmatprep.subr.bf16.mxu0 0
  %1428 = vmatpush1.bf16.msra.mxu0 0
  %1429 = vmatprep.subr.bf16.mxu0 0
  %1430 = vmatpush1.bf16.msra.mxu0 0
  %1431 = vmatprep.mubr.bf16.mxu0 0
  %1432 = vmatmul.mubr.bf16.gmra.mrb[0].mxu0 %v1376
  %v1433 = vpop.f32.mrb[0].mxu0
  %v1434 = vadd.f32 %v1257, %v1433
  %v1435 = vpop.f32.mrb[0].mxu0
  %v1436 = vpop.f32.mrb[0].mxu0
  %v1437 = vadd.f32 %v1262, %v1436
  %v1438 = vpop.f32.mrb[0].mxu0
  %1439 = vmatprep.mubr.bf16.mxu0 0
  %1440 = vmatmul.mubr.bf16.gmra.mrb[0].mxu0 %v1379
  %v1441 = vpop.f32.mrb[0].mxu0
  %v1442 = vadd.f32 %v1267, %v1441
  %v1443 = vpop.f32.mrb[0].mxu0
  %v1444 = vpop.f32.mrb[0].mxu0
  %v1445 = vadd.f32 %v1272, %v1444
  %v1446 = vpop.f32.mrb[0].mxu0
  %1447 = vmatprep.mubr.bf16.mxu0 0
  %1448 = vmatmul.mubr.bf16.gmra.mrb[0].mxu0 %v1382
  %v1449 = vpop.f32.mrb[0].mxu0
  %v1450 = vadd.f32 %v1277, %v1449
  %v1451 = vpop.f32.mrb[0].mxu0
  %v1452 = vpop.f32.mrb[0].mxu0
  %v1453 = vadd.f32 %v1282, %v1452
  %v1454 = vpop.f32.mrb[0].mxu0
  %1455 = vmatprep.mubr.bf16.mxu0 0
  %1456 = vmatmul.mubr.bf16.gmra.mrb[0].mxu0 %v1385
  %v1457 = vpop.f32.mrb[0].mxu0
  %v1458 = vadd.f32 %v1287, %v1457
  %v1459 = vpop.f32.mrb[0].mxu0
  %v1460 = vpop.f32.mrb[0].mxu0
  %v1461 = vadd.f32 %v1292, %v1460
  %v1462 = vpop.f32.mrb[0].mxu0
  %1463 = vmatprep.mubr.bf16.mxu0 0
  %1464 = vmatmul.mubr.bf16.gmra.mrb[0].mxu0 %v1388
  %v1465 = vpop.f32.mrb[0].mxu0
  %v1466 = vadd.f32 %v1297, %v1465
  %v1467 = vpop.f32.mrb[0].mxu0
  %v1468 = vpop.f32.mrb[0].mxu0
  %v1469 = vadd.f32 %v1302, %v1468
  %v1470 = vpop.f32.mrb[0].mxu0
  %1471 = vmatprep.mubr.bf16.mxu0 0
  %1472 = vmatmul.mubr.bf16.gmra.mrb[0].mxu0 %v1391
  %v1473 = vpop.f32.mrb[0].mxu0
  %v1474 = vadd.f32 %v1307, %v1473
  %v1475 = vpop.f32.mrb[0].mxu0
  %v1476 = vpop.f32.mrb[0].mxu0
  %v1477 = vadd.f32 %v1312, %v1476
  %v1478 = vpop.f32.mrb[0].mxu0
  %1479 = vmatprep.mubr.bf16.mxu0 0
  %1480 = vmatmul.mubr.bf16.gmra.mrb[0].mxu0 %v1394
  %v1481 = vpop.f32.mrb[0].mxu0
  %v1482 = vadd.f32 %v1317, %v1481
  %v1483 = vpop.f32.mrb[0].mxu0
  %v1484 = vpop.f32.mrb[0].mxu0
  %v1485 = vadd.f32 %v1322, %v1484
  %v1486 = vpop.f32.mrb[0].mxu0
  %1487 = vmatprep.mubr.bf16.mxu0 0
  %1488 = vmatmul.mubr.bf16.gmra.mrb[0].mxu0 %v1397
  %v1489 = vpop.f32.mrb[0].mxu0
  %v1490 = vadd.f32 %v1327, %v1489
  %v1491 = vpop.f32.mrb[0].mxu0
  %v1492 = vpop.f32.mrb[0].mxu0
  %v1493 = vadd.f32 %v1332, %v1492
  %v1494 = vpop.f32.mrb[0].mxu0
  %1495 = vdwg.mxu0
  %v1496 = vmul.f32 %v1434, 0.5
  %v1497 = vmul.f32 %v1437, 0.5
  %v1498 = vmul.f32 %v1442, 0.5
  %v1499 = vmul.f32 %v1445, 0.5
  %v1500 = vmul.f32 %v1450, 0.5
  %v1501 = vmul.f32 %v1453, 0.5
  %v1502 = vmul.f32 %v1458, 0.5
  %v1503 = vmul.f32 %v1461, 0.5
  %v1504 = vmul.f32 %v1466, 0.5
  %v1505 = vmul.f32 %v1469, 0.5
  %v1506 = vmul.f32 %v1474, 0.5
  %v1507 = vmul.f32 %v1477, 0.5
  %v1508 = vmul.f32 %v1482, 0.5
  %v1509 = vmul.f32 %v1485, 0.5
  %v1510 = vmul.f32 %v1490, 0.5
  %v1511 = vmul.f32 %v1493, 0.5
  %v1512 = vmul.f32 %v1434, 0.044715
  %v1513 = vmul.f32 %v1437, 0.044715
  %v1514 = vmul.f32 %v1442, 0.044715
  %v1515 = vmul.f32 %v1445, 0.044715
  %v1516 = vmul.f32 %v1450, 0.044715
  %v1517 = vmul.f32 %v1453, 0.044715
  %v1518 = vmul.f32 %v1458, 0.044715
  %v1519 = vmul.f32 %v1461, 0.044715
  %v1520 = vmul.f32 %v1466, 0.044715
  %v1521 = vmul.f32 %v1469, 0.044715
  %v1522 = vmul.f32 %v1474, 0.044715
  %v1523 = vmul.f32 %v1477, 0.044715
  %v1524 = vmul.f32 %v1482, 0.044715
  %v1525 = vmul.f32 %v1485, 0.044715
  %v1526 = vmul.f32 %v1490, 0.044715
  %v1527 = vmul.f32 %v1493, 0.044715
  %v1528 = vmul.f32 %v1512, %v1434
  %v1529 = vmul.f32 %v1513, %v1437
  %v1530 = vmul.f32 %v1514, %v1442
  %v1531 = vmul.f32 %v1515, %v1445
  %v1532 = vmul.f32 %v1516, %v1450
  %v1533 = vmul.f32 %v1517, %v1453
  %v1534 = vmul.f32 %v1518, %v1458
  %v1535 = vmul.f32 %v1519, %v1461
  %v1536 = vmul.f32 %v1520, %v1466
  %v1537 = vmul.f32 %v1521, %v1469
  %v1538 = vmul.f32 %v1522, %v1474
  %v1539 = vmul.f32 %v1523, %v1477
  %v1540 = vmul.f32 %v1524, %v1482
  %v1541 = vmul.f32 %v1525, %v1485
  %v1542 = vmul.f32 %v1526, %v1490
  %v1543 = vmul.f32 %v1527, %v1493
  %v1544 = vmul.f32 %v1528, %v1434
  %v1545 = vmul.f32 %v1529, %v1437
  %v1546 = vmul.f32 %v1530, %v1442
  %v1547 = vmul.f32 %v1531, %v1445
  %v1548 = vmul.f32 %v1532, %v1450
  %v1549 = vmul.f32 %v1533, %v1453
  %v1550 = vmul.f32 %v1534, %v1458
  %v1551 = vmul.f32 %v1535, %v1461
  %v1552 = vmul.f32 %v1536, %v1466
  %v1553 = vmul.f32 %v1537, %v1469
  %v1554 = vmul.f32 %v1538, %v1474
  %v1555 = vmul.f32 %v1539, %v1477
  %v1556 = vmul.f32 %v1540, %v1482
  %v1557 = vmul.f32 %v1541, %v1485
  %v1558 = vmul.f32 %v1542, %v1490
  %v1559 = vmul.f32 %v1543, %v1493
  %v1560 = vadd.f32 %v1434, %v1544
  %v1561 = vadd.f32 %v1437, %v1545
  %v1562 = vadd.f32 %v1442, %v1546
  %v1563 = vadd.f32 %v1445, %v1547
  %v1564 = vadd.f32 %v1450, %v1548
  %v1565 = vadd.f32 %v1453, %v1549
  %v1566 = vadd.f32 %v1458, %v1550
  %v1567 = vadd.f32 %v1461, %v1551
  %v1568 = vadd.f32 %v1466, %v1552
  %v1569 = vadd.f32 %v1469, %v1553
  %v1570 = vadd.f32 %v1474, %v1554
  %v1571 = vadd.f32 %v1477, %v1555
  %v1572 = vadd.f32 %v1482, %v1556
  %v1573 = vadd.f32 %v1485, %v1557
  %v1574 = vadd.f32 %v1490, %v1558
  %v1575 = vadd.f32 %v1493, %v1559
  %v1576 = vmul.f32 %v1560, 0.7978846
  %v1577 = vmul.f32 %v1561, 0.7978846
  %v1578 = vmul.f32 %v1562, 0.7978846
  %v1579 = vmul.f32 %v1563, 0.7978846
  %v1580 = vmul.f32 %v1564, 0.7978846
  %v1581 = vmul.f32 %v1565, 0.7978846
  %v1582 = vmul.f32 %v1566, 0.7978846
  %v1583 = vmul.f32 %v1567, 0.7978846
  %v1584 = vmul.f32 %v1568, 0.7978846
  %v1585 = vmul.f32 %v1569, 0.7978846
  %v1586 = vmul.f32 %v1570, 0.7978846
  %v1587 = vmul.f32 %v1571, 0.7978846
  %v1588 = vmul.f32 %v1572, 0.7978846
  %v1589 = vmul.f32 %v1573, 0.7978846
  %v1590 = vmul.f32 %v1574, 0.7978846
  %v1591 = vmul.f32 %v1575, 0.7978846
  %v1592 = vtanh.pop %v1576
  %v1593 = vtanh.pop %v1577
  %v1594 = vtanh.pop %v1578
  %v1595 = vtanh.pop %v1579
  %v1596 = vtanh.pop %v1580
  %v1597 = vtanh.pop %v1581
  %v1598 = vtanh.pop %v1582
  %v1599 = vtanh.pop %v1583
  %v1600 = vtanh.pop %v1584
  %v1601 = vtanh.pop %v1585
  %v1602 = vtanh.pop %v1586
  %v1603 = vtanh.pop %v1587
  %v1604 = vtanh.pop %v1588
  %v1605 = vtanh.pop %v1589
  %v1606 = vtanh.pop %v1590
  %v1607 = vtanh.pop %v1591
  %v1608 = vadd.f32 %v1592, 1.0
  %v1609 = vadd.f32 %v1593, 1.0
  %v1610 = vadd.f32 %v1594, 1.0
  %v1611 = vadd.f32 %v1595, 1.0
  %v1612 = vadd.f32 %v1596, 1.0
  %v1613 = vadd.f32 %v1597, 1.0
  %v1614 = vadd.f32 %v1598, 1.0
  %v1615 = vadd.f32 %v1599, 1.0
  %v1616 = vadd.f32 %v1600, 1.0
  %v1617 = vadd.f32 %v1601, 1.0
  %v1618 = vadd.f32 %v1602, 1.0
  %v1619 = vadd.f32 %v1603, 1.0
  %v1620 = vadd.f32 %v1604, 1.0
  %v1621 = vadd.f32 %v1605, 1.0
  %v1622 = vadd.f32 %v1606, 1.0
  %v1623 = vadd.f32 %v1607, 1.0
  %v1624 = vmul.f32 %v1496, %v1608
  %v1625 = vmul.f32 %v1497, %v1609
  %v1626 = vmul.f32 %v1498, %v1610
  %v1627 = vmul.f32 %v1499, %v1611
  %v1628 = vmul.f32 %v1500, %v1612
  %v1629 = vmul.f32 %v1501, %v1613
  %v1630 = vmul.f32 %v1502, %v1614
  %v1631 = vmul.f32 %v1503, %v1615
  %v1632 = vmul.f32 %v1504, %v1616
  %v1633 = vmul.f32 %v1505, %v1617
  %v1634 = vmul.f32 %v1506, %v1618
  %v1635 = vmul.f32 %v1507, %v1619
  %v1636 = vmul.f32 %v1508, %v1620
  %v1637 = vmul.f32 %v1509, %v1621
  %v1638 = vmul.f32 %v1510, %v1622
  %v1639 = vmul.f32 %v1511, %v1623
  %v1640 = vld [vmem:[%s13] sm:$0xff]
  %v1641 = vld [vmem:[%s13 + $0x8] sm:$0xff]
  %v1642 = vld [vmem:[%s13 + $0x10] sm:$0xff]
  %v1643 = vld [vmem:[%s13 + $0x18] sm:$0xff]
  %v1644 = vld [vmem:[%s13 + $0x20] sm:$0xff]
  %v1645 = vld [vmem:[%s13 + $0x28] sm:$0xff]
  %v1646 = vld [vmem:[%s13 + $0x30] sm:$0xff]
  %v1647 = vld [vmem:[%s13 + $0x38] sm:$0xff]
  %v1648 = vld [vmem:[%s13 + $0x40] sm:$0xff]
  %v1649 = vld [vmem:[%s13 + $0x48] sm:$0xff]
  %v1650 = vld [vmem:[%s13 + $0x50] sm:$0xff]
  %v1651 = vld [vmem:[%s13 + $0x58] sm:$0xff]
  %v1652 = vld [vmem:[%s13 + $0x60] sm:$0xff]
  %v1653 = vld [vmem:[%s13 + $0x68] sm:$0xff]
  %v1654 = vld [vmem:[%s13 + $0x70] sm:$0xff]
  %v1655 = vld [vmem:[%s13 + $0x78] sm:$0xff]
  %1657 = vset.pattern.permute.xlu0 0
  %1658 = vperm.xlu0 %1657, %v1640
  %v1659 = vpop.permute.xlu0 %1658
  %1662 = vset.pattern.permute.xlu0 0
  %1663 = vperm.xlu0 %1662, %v1641
  %v1664 = vpop.permute.xlu0 %1663
  %1667 = vset.pattern.permute.xlu0 0
  %1668 = vperm.xlu0 %1667, %v1642
  %v1669 = vpop.permute.xlu0 %1668
  %1672 = vset.pattern.permute.xlu0 0
  %1673 = vperm.xlu0 %1672, %v1643
  %v1674 = vpop.permute.xlu0 %1673
  %1677 = vset.pattern.permute.xlu0 0
  %1678 = vperm.xlu0 %1677, %v1644
  %v1679 = vpop.permute.xlu0 %1678
  %1682 = vset.pattern.permute.xlu0 0
  %1683 = vperm.xlu0 %1682, %v1645
  %v1684 = vpop.permute.xlu0 %1683
  %1687 = vset.pattern.permute.xlu0 0
  %1688 = vperm.xlu0 %1687, %v1646
  %v1689 = vpop.permute.xlu0 %1688
  %1692 = vset.pattern.permute.xlu0 0
  %1693 = vperm.xlu0 %1692, %v1647
  %v1694 = vpop.permute.xlu0 %1693
  %1697 = vset.pattern.permute.xlu0 0
  %1698 = vperm.xlu0 %1697, %v1648
  %v1699 = vpop.permute.xlu0 %1698
  %1702 = vset.pattern.permute.xlu0 0
  %1703 = vperm.xlu0 %1702, %v1649
  %v1704 = vpop.permute.xlu0 %1703
  %1707 = vset.pattern.permute.xlu0 0
  %1708 = vperm.xlu0 %1707, %v1650
  %v1709 = vpop.permute.xlu0 %1708
  %1712 = vset.pattern.permute.xlu0 0
  %1713 = vperm.xlu0 %1712, %v1651
  %v1714 = vpop.permute.xlu0 %1713
  %1717 = vset.pattern.permute.xlu0 0
  %1718 = vperm.xlu0 %1717, %v1652
  %v1719 = vpop.permute.xlu0 %1718
  %1722 = vset.pattern.permute.xlu0 0
  %1723 = vperm.xlu0 %1722, %v1653
  %v1724 = vpop.permute.xlu0 %1723
  %1727 = vset.pattern.permute.xlu0 0
  %1728 = vperm.xlu0 %1727, %v1654
  %v1729 = vpop.permute.xlu0 %1728
  %1732 = vset.pattern.permute.xlu0 0
  %1733 = vperm.xlu0 %1732, %v1655
  %v1734 = vpop.permute.xlu0 %1733
  %v1736 = vmul.f32 %v1624, %v1659
  %v1737 = vmul.f32 %v1625, %v1664
  %v1738 = vmul.f32 %v1626, %v1669
  %v1739 = vmul.f32 %v1627, %v1674
  %v1740 = vmul.f32 %v1628, %v1679
  %v1741 = vmul.f32 %v1629, %v1684
  %v1742 = vmul.f32 %v1630, %v1689
  %v1743 = vmul.f32 %v1631, %v1694
  %v1744 = vmul.f32 %v1632, %v1699
  %v1745 = vmul.f32 %v1633, %v1704
  %v1746 = vmul.f32 %v1634, %v1709
  %v1747 = vmul.f32 %v1635, %v1714
  %v1748 = vmul.f32 %v1636, %v1719
  %v1749 = vmul.f32 %v1637, %v1724
  %v1750 = vmul.f32 %v1638, %v1729
  %v1751 = vmul.f32 %v1639, %v1734
  %v1752 = vsel %vm104, %v1736, 0.0
  %v1753 = vsel %vm104, %v1737, 0.0
  %v1754 = vadd.f32 %v1752, %v1753
  %v1755 = vsel %vm104, %v1738, 0.0
  %v1756 = vadd.f32 %v1754, %v1755
  %v1757 = vsel %vm104, %v1739, 0.0
  %v1758 = vadd.f32 %v1756, %v1757
  %v1759 = vsel %vm104, %v1740, 0.0
  %v1760 = vadd.f32 %v1758, %v1759
  %v1761 = vsel %vm104, %v1741, 0.0
  %v1762 = vadd.f32 %v1760, %v1761
  %v1763 = vsel %vm104, %v1742, 0.0
  %v1764 = vadd.f32 %v1762, %v1763
  %v1765 = vsel %vm104, %v1743, 0.0
  %v1766 = vadd.f32 %v1764, %v1765
  %v1767 = vsel %vm104, %v1744, 0.0
  %v1768 = vadd.f32 %v1766, %v1767
  %v1769 = vsel %vm104, %v1745, 0.0
  %v1770 = vadd.f32 %v1768, %v1769
  %v1771 = vsel %vm104, %v1746, 0.0
  %v1772 = vadd.f32 %v1770, %v1771
  %v1773 = vsel %vm104, %v1747, 0.0
  %v1774 = vadd.f32 %v1772, %v1773
  %v1775 = vsel %vm104, %v1748, 0.0
  %v1776 = vadd.f32 %v1774, %v1775
  %v1777 = vsel %vm104, %v1749, 0.0
  %v1778 = vadd.f32 %v1776, %v1777
  %v1779 = vsel %vm104, %v1750, 0.0
  %v1780 = vadd.f32 %v1778, %v1779
  %v1781 = vsel %vm104, %v1751, 0.0
  %v1782 = vadd.f32 %v1780, %v1781
  %v1783 = vrot.slane %v1782, 4
  %v1784 = vadd.f32 %v1782, %v1783
  %v1785 = vrot.slane %v1784, 2
  %v1786 = vadd.f32 %v1784, %v1785
  %v1787 = vrot.slane %v1786, 1
  %v1788 = vadd.f32 %v1786, %v1787
  %v1789 = vld [vmem:[#allocation3] sm:$0x1]
  %1791 = vset.pattern.permute.xlu0 0
  %1792 = vperm.xlu0 %1791, %v1789
  %v1793 = vpop.permute.xlu0 %1792
  %v1795 = vlaneseq
  %v1796 = vshrl.u32 %v1795, 7
  %v1797 = vsub.s32 0, %v1796
  %v1798 = vrot.slane %v1793, %v1797
  %v1799 = vadd.f32 %v1788, %v1798
  %vm1800 = vcmask 286720
  %1801 = vst.msk [vmem:[%s15] sm:$0x1] %vm1800, %v1799
  // Predicated region
  $region62: #{dpfno1d_forward.1} parent=0 // pred_check
    _
  $region63: #{dpfno1d_forward.1} parent=0 // pred_check_branch
    %1803 = sbr.rel (0) target = $region65
  $region64: #{dpfno1d_forward.1} parent=0 // pred_region
    _
  $region65: #{dpfno1d_forward.1} parent=0 // pred_fallthru
    _
  // Predicated region
  $region66: #{dpfno1d_forward.1} parent=0 // pred_check
    _
  $region67: #{dpfno1d_forward.1} parent=0 // pred_check_branch
    %1805 = sbr.rel (0) target = $region69
  $region68: #{dpfno1d_forward.1} parent=0 // pred_region
    _
  $region69: #{dpfno1d_forward.1} parent=0 // pred_fallthru
    _

</llo_original>
